<compile_context>
chip_gen: v7x
topology: tpu7x:2x2x1
jax: 0.10.0
libtpu: 0.0.40
codegen_flags: <defaults>
</compile_context>

<pallas_src>
import functools

import numpy as np

import jax
import jax.numpy as jnp
from jax import lax
from jax.experimental import pallas as pl
from jax.experimental.pallas import tpu as pltpu

KSIZE = 7
PAD = (KSIZE - 1) // 2
_SB = 8          # in-register batch sub-tile processed at once inside the kernel


def _sigmoid(z):
    # exp goes to the EUP; keep the reciprocal exact (approx=True would be free
    # on the EUP too, but we keep full f32 precision for the reference check).
    return pl.reciprocal(1.0 + jnp.exp(-z), approx=False)


def _attention_kernel(x_ref, w1_ref, w2t_ref, b2_ref, wtap_ref, b1_ref, cb_ref,
                      out_ref, scale_ref, map2_ref,
                      *, sub_b, c_chunk, shifts, inv_hw, inv_c):
    bt, c, hw = x_ref.shape
    cr = w1_ref.shape[0]
    n_sub = bt // sub_b
    n_cc = c // c_chunk

    # Small loop-invariant parameters (a few vregs each).
    w1 = w1_ref[...]                                    # (Cr, C)
    w2t = w2t_ref[...]                                  # (Cr, C)  rows = columns of W2
    b2 = b2_ref[...]                                    # (1, C)
    cb = cb_ref[0]                                      # SMEM scalar

    def load_chunk(b0, k):
        return x_ref[pl.ds(b0, sub_b),
                     pl.ds(k * c_chunk, c_chunk), :].astype(jnp.float32)

    def sub_tile(s, carry):
        b0 = s * sub_b
        if not isinstance(b0, int):
            b0 = pl.multiple_of(b0, sub_b)              # aligned sub-tile start

        # ---- Pass 1: per-channel mean / max over HW (streamed chunks) -----
        sums, maxs = [], []
        for k in range(n_cc):
            xc = load_chunk(b0, k)                      # (SB, Cc, HW)
            sums.append(jnp.sum(xc, axis=2))            # (SB, Cc)  lane reduce
            maxs.append(jnp.max(xc, axis=2))
        avg = jnp.concatenate(sums, axis=1) * inv_hw    # (SB, C)
        mx = jnp.concatenate(maxs, axis=1)              # (SB, C)

        # ---- Channel MLP on the VPU; fused second layer:
        #      MLP(avg)+MLP(max) = sum_j (relu(za_j)+relu(zm_j)) * W2[:,j] + 2*b2
        pooled = jnp.stack([avg, mx], axis=0)           # (2, SB, C)
        logits = 2.0 * b2 + jnp.zeros((sub_b, c), jnp.float32)
        for j in range(cr):
            z = jnp.sum(pooled * w1[j:j + 1, :], axis=2,
                        keepdims=True) + b1_ref[j]      # (2, SB, 1) single reduce
            hj = jnp.maximum(z[0], 0.0) + jnp.maximum(z[1], 0.0)   # (SB, 1)
            logits = logits + hj * w2t[j:j + 1, :]
        scale = _sigmoid(logits)                        # (SB, C)
        scale_ref[0, pl.ds(b0, sub_b), :] = scale

        # ---- Pass 2: spatial max / mean over channels of out1 = x*scale ---
        ch_max = None
        ch_sum = None
        for k in range(n_cc):
            xc = load_chunk(b0, k)                      # re-read from VMEM
            sc = scale[:, k * c_chunk:(k + 1) * c_chunk][:, :, None]
            o1 = xc * sc                                # (SB, Cc, HW)
            m = jnp.max(o1, axis=1)
            sm = jnp.sum(o1, axis=1)
            ch_max = m if ch_max is None else jnp.maximum(ch_max, m)
            ch_sum = sm if ch_sum is None else ch_sum + sm
        maps = jnp.concatenate([ch_max, ch_sum * inv_c], axis=0)   # (2*SB, HW)

        # ---- 7x7 conv: ONE lane roll per tap + pre-masked/broadcast weights
        acc0 = jnp.zeros((2 * sub_b, hw), jnp.float32)
        acc1 = jnp.zeros((2 * sub_b, hw), jnp.float32)
        for ti, sh in enumerate(shifts):
            rolled = maps if sh == 0 else pltpu.roll(maps, shift=sh, axis=1)
            contrib = rolled * wtap_ref[ti]             # roll + mul + add
            if ti % 2 == 0:
                acc0 = acc0 + contrib
            else:
                acc1 = acc1 + contrib
        acc = acc0 + acc1
        sp_map = _sigmoid(acc[:sub_b, :] + acc[sub_b:, :] + cb)    # (SB, HW)
        map2_ref[0, pl.ds(b0, sub_b), :] = sp_map

        # ---- Pass 3: out2 = x * scale * sp_map (recompute out1; streamed) --
        spb = sp_map[:, None, :]
        for k in range(n_cc):
            xc = load_chunk(b0, k)
            sc = scale[:, k * c_chunk:(k + 1) * c_chunk][:, :, None]
            out_ref[pl.ds(b0, sub_b), pl.ds(k * c_chunk, c_chunk), :] = \
                (xc * sc * spb).astype(out_ref.dtype)
        return carry

    if n_sub == 1:
        sub_tile(0, 0)
    else:
        lax.fori_loop(0, n_sub, sub_tile, 0)   # bounds live ranges across sub-tiles


def _pick_batch_tiling(B, bytes_per_item):
    """Pick (Bt, steps, vmem_bytes) for the batch grid axis per generation."""
    try:
        vmem_bytes = int(pltpu.get_tpu_info().vmem_capacity_bytes)
    except Exception:
        vmem_bytes = 64 << 20            # conservative default (v7x per-TC VMEM)
    # ~5 block-sized buffers are live at once (in x2 + out x2 + misc); keep the
    # whole pipeline well under half of physical VMEM.
    block_budget = max(bytes_per_item, (2 * vmem_bytes // 5) // 5)
    bt_cap = int(max(1, min(block_budget // bytes_per_item, 256)))
    steps = pl.cdiv(B, bt_cap)
    if B >= 2 and steps < 2:
        steps = 2                        # >=2 grid steps so v7x can split the batch axis
    bt = pl.cdiv(B, steps)
    if bt > _SB:
        bt = _SB * pl.cdiv(bt, _SB)      # whole number of in-kernel sub-tiles
    steps = pl.cdiv(B, bt)
    return bt, steps, vmem_bytes


def attention_block(x, params, *, io_dtype=None, expand_map1=True):
    """x: (B, C, H, W).  Returns (out2, (map1, map2)) like the torch module.

    io_dtype=jnp.bfloat16 halves HBM traffic (v6e/v7x); expand_map1=False
    returns the channel scale as (B, C, 1, 1) and skips the full-size HBM
    materialization of the broadcast.
    """
    B, C, H, W = x.shape
    HW = H * W
    w1, b1, w2, b2, cw, cb = params
    Cr = w1.shape[0]
    io = jnp.dtype(io_dtype) if io_dtype is not None else jnp.dtype(jnp.float32)
    itemsize = io.itemsize

    Bt, steps, vmem_bytes = _pick_batch_tiling(B, C * HW * itemsize)
    Bp = steps * Bt
    SB = min(Bt, _SB)                    # in-register batch sub-tile (divides Bt)
    CC = min(C, 8)                       # channel chunk for the streamed passes
    while C % CC:
        CC -= 1

    # Lane-dense activations; pad batch with zeros (finite, sliced away below).
    x_flat = x.reshape(B, C, HW).astype(io)
    if Bp != B:
        x_flat = jnp.pad(x_flat, ((0, Bp - B), (0, 0), (0, 0)))

    # MLP parameters.
    w1_m = jnp.asarray(w1, jnp.float32)                   # (Cr, C)
    b1_v = jnp.asarray(b1, jnp.float32).reshape(Cr)       # (Cr,)  -> SMEM
    w2_t = jnp.asarray(w2, jnp.float32).T                 # (Cr, C) columns of W2
    b2_r = jnp.asarray(b2, jnp.float32).reshape(1, C)     # (1, C)
    cb_v = jnp.asarray(cb, jnp.float32).reshape(1)        # (1,)   -> SMEM

    # Pre-masked, pre-broadcast 7x7 tap table: (49, 2*SB, HW).
    # Row layout matches the in-kernel concat([ch_max(SB), ch_avg(SB)]).
    lane = np.arange(HW)
    hh, ww = lane // W, lane % W
    valid = np.zeros((KSIZE * KSIZE, HW), np.float32)
    shifts = []
    for kh in range(KSIZE):
        dh = kh - PAD
        for kw in range(KSIZE):
            dw = kw - PAD
            t = kh * KSIZE + kw
            valid[t] = ((hh + dh >= 0) & (hh + dh < H) &
                        (ww + dw >= 0) & (ww + dw < W))
            shifts.append((-(dh * W + dw)) % HW)
    shifts = tuple(shifts)
    cw_t = jnp.asarray(cw, jnp.float32).reshape(2, KSIZE * KSIZE)  # [0]=max, [1]=avg
    wtap = cw_t.T[:, :, None] * jnp.asarray(valid)[:, None, :]     # (49, 2, HW)
    wtap = jnp.repeat(wtap, SB, axis=1)                            # (49, 2*SB, HW)

    kernel = functools.partial(_attention_kernel, sub_b=SB, c_chunk=CC,
                               shifts=shifts, inv_hw=1.0 / HW, inv_c=1.0 / C)

    # Explicit pipeline footprint -> scoped VMEM limit (v5e default is 16 MiB).
    block_bytes = Bt * C * HW * itemsize
    footprint = (4 * block_bytes                              # x + out, double-buffered
                 + 2 * (Bt * C * 4 + Bt * HW * 4)             # scale + map2 blocks
                 + 2 * KSIZE * KSIZE * max(2 * SB, 8) * HW * 4  # tap table
                 + (2 << 20))
    vmem_limit = int(min(0.9 * vmem_bytes, max(footprint, 32 << 20)))

    out_flat, scale_o, map2_o = pl.pallas_call(
        kernel,
        out_shape=(
            jax.ShapeDtypeStruct((Bp, C, HW), io),
            jax.ShapeDtypeStruct((steps, Bt, C), jnp.float32),
            jax.ShapeDtypeStruct((steps, Bt, HW), jnp.float32),
        ),
        grid=(steps,),
        in_specs=[
            pl.BlockSpec((Bt, C, HW), lambda b: (b, 0, 0)),
            pl.BlockSpec((Cr, C), lambda b: (0, 0)),
            pl.BlockSpec((Cr, C), lambda b: (0, 0)),
            pl.BlockSpec((1, C), lambda b: (0, 0)),
            pl.BlockSpec((KSIZE * KSIZE, 2 * SB, HW), lambda b: (0, 0, 0)),
            pl.BlockSpec(memory_space=pltpu.MemorySpace.SMEM),   # b1
            pl.BlockSpec(memory_space=pltpu.MemorySpace.SMEM),   # conv bias
        ],
        out_specs=[
            pl.BlockSpec((Bt, C, HW), lambda b: (b, 0, 0)),
            pl.BlockSpec((1, Bt, C), lambda b: (b, 0, 0)),
            pl.BlockSpec((1, Bt, HW), lambda b: (b, 0, 0)),
        ],
        compiler_params=pltpu.CompilerParams(
            dimension_semantics=("parallel",),      # batch axis -> v7x megacore
            vmem_limit_bytes=vmem_limit),
    )(x_flat, w1_m, w2_t, b2_r, wtap, b1_v, cb_v)

    out2 = out_flat[:B].reshape(B, C, H, W)
    scale2 = scale_o.reshape(Bp, C)[:B]
    map2 = map2_o.reshape(Bp, HW)[:B].reshape(B, 1, H, W)
    map1 = scale2[:, :, None, None]
    if expand_map1:
        # Matches torch's .expand_as(x); pass expand_map1=False to avoid the
        # extra full-size HBM write when the consumer can broadcast itself.
        map1 = jnp.broadcast_to(map1, (B, C, H, W))
    return out2, (map1, map2)


def attention_block_ref(x, params):
    """Pure-JAX reference mirroring the PyTorch forward (high-precision dots)."""
    w1, b1, w2, b2, cw, cb = params
    avg = x.mean(axis=(2, 3))
    mx = x.max(axis=(2, 3))

    def mlp(v):
        h = jnp.maximum(jnp.dot(v, w1.T, precision=lax.Precision.HIGHEST) + b1, 0.0)
        return jnp.dot(h, w2.T, precision=lax.Precision.HIGHEST) + b2

    scale = jax.nn.sigmoid(mlp(avg) + mlp(mx))
    map1 = jnp.broadcast_to(scale[:, :, None, None], x.shape)
    out1 = x * map1

    agg = jnp.concatenate([out1.max(axis=1, keepdims=True),
                           out1.mean(axis=1, keepdims=True)], axis=1)
    conv = lax.conv_general_dilated(
        agg, cw, window_strides=(1, 1), padding=((PAD, PAD), (PAD, PAD)),
        dimension_numbers=("NCHW", "OIHW", "NCHW"),
        precision=lax.Precision.HIGHEST) + cb.reshape(1, 1, 1, 1)
    map2 = jax.nn.sigmoid(conv)
    out2 = out1 * map2
    return out2, (map1, map2)


if __name__ == "__main__":
    key = jax.random.PRNGKey(0)
    B, C, H, W = 2, 32, 16, 16          # reduction_ratio=16 -> hidden dim 2
    Cr = C // 16
    ks = jax.random.split(key, 7)

    x = jax.random.normal(ks[0], (B, C, H, W), jnp.float32)
    # PyTorch-shaped parameters, deterministic init.
    w1 = jax.random.normal(ks[1], (Cr, C), jnp.float32) * 0.1      # Linear(C, C//16).weight
    b1 = jax.random.normal(ks[2], (Cr,), jnp.float32) * 0.1
    w2 = jax.random.normal(ks[3], (C, Cr), jnp.float32) * 0.1      # Linear(C//16, C).weight
    b2 = jax.random.normal(ks[4], (C,), jnp.float32) * 0.1
    cw = jax.random.normal(ks[5], (1, 2, KSIZE, KSIZE), jnp.float32) * 0.1  # Conv2d(2,1,7)
    cb = jax.random.normal(ks[6], (1,), jnp.float32) * 0.1
    params = (w1, b1, w2, b2, cw, cb)

    out2, (map1, map2) = attention_block(x, params)
    jax.block_until_ready((out2, map1, map2))

    r_out2, (r_map1, r_map2) = attention_block_ref(x, params)
    assert jnp.allclose(out2, r_out2, atol=1e-4, rtol=1e-4)
    assert jnp.allclose(map1, r_map1, atol=1e-4, rtol=1e-4)
    assert jnp.allclose(map2, r_map2, atol=1e-4, rtol=1e-4)
    print("KERNEL_OK")
</pallas_src>

<mosaic_0001>
module attributes {stable_mosaic.version = 11 : i64} {
  func.func @_attention_kernel(%arg0: i32, %arg1: memref<1x32x256xf32, #tpu.memory_space<vmem>>, %arg2: memref<2x32xf32, #tpu.memory_space<vmem>>, %arg3: memref<2x32xf32, #tpu.memory_space<vmem>>, %arg4: memref<1x32xf32, #tpu.memory_space<vmem>>, %arg5: memref<49x2x256xf32, #tpu.memory_space<vmem>>, %arg6: memref<2xf32, #tpu.memory_space<smem>>, %arg7: memref<1xf32, #tpu.memory_space<smem>>, %arg8: memref<1x32x256xf32, #tpu.memory_space<vmem>>, %arg9: memref<1x1x32xf32, #tpu.memory_space<vmem>>, %arg10: memref<1x1x256xf32, #tpu.memory_space<vmem>>) attributes {dimension_semantics = [#tpu.dimension_semantics<parallel>], iteration_bounds = array<i64: 2>, scalar_prefetch = 0 : i64, scratch_operands = 0 : i64, tpu.core_type = #tpu.core_type<tc>, window_params = [{transform_indices = @transform_0, window_bounds = array<i64: 1, 32, 256>}, {pipeline_mode = #tpu.pipeline_mode<synchronous>, transform_indices = @transform_1, window_bounds = array<i64: 2, 32>}, {pipeline_mode = #tpu.pipeline_mode<synchronous>, transform_indices = @transform_2, window_bounds = array<i64: 2, 32>}, {pipeline_mode = #tpu.pipeline_mode<synchronous>, transform_indices = @transform_3, window_bounds = array<i64: 1, 32>}, {pipeline_mode = #tpu.pipeline_mode<synchronous>, transform_indices = @transform_4, window_bounds = array<i64: 49, 2, 256>}, {transform_indices = @transform_5, window_bounds = array<i64: 2>}, {transform_indices = @transform_6, window_bounds = array<i64: 1>}, {transform_indices = @transform_7, window_bounds = array<i64: 1, 32, 256>}, {transform_indices = @transform_8, window_bounds = array<i64: 1, 1, 32>}, {transform_indices = @transform_9, window_bounds = array<i64: 1, 1, 256>}]} {
    %c0 = arith.constant 0 : index
    %c0_0 = arith.constant 0 : index
    %0 = vector.load %arg2[%c0, %c0_0] : memref<2x32xf32, #tpu.memory_space<vmem>>, vector<2x32xf32>
    %c0_1 = arith.constant 0 : index
    %c0_2 = arith.constant 0 : index
    %1 = vector.load %arg3[%c0_1, %c0_2] : memref<2x32xf32, #tpu.memory_space<vmem>>, vector<2x32xf32>
    %c0_3 = arith.constant 0 : index
    %c0_4 = arith.constant 0 : index
    %2 = vector.load %arg4[%c0_3, %c0_4] : memref<1x32xf32, #tpu.memory_space<vmem>>, vector<1x32xf32>
    %c0_5 = arith.constant 0 : index
    %3 = memref.load %arg7[%c0_5] : memref<1xf32, #tpu.memory_space<smem>>
    %c0_6 = arith.constant 0 : index
    %c0_7 = arith.constant 0 : index
    %c0_8 = arith.constant 0 : index
    %4 = vector.load %arg1[%c0_6, %c0_7, %c0_8] : memref<1x32x256xf32, #tpu.memory_space<vmem>>, vector<1x8x256xf32>
    %cst = arith.constant dense<0.000000e+00> : vector<1x8xf32>
    %5 = vector.multi_reduction <add>, %4, %cst [2] : vector<1x8x256xf32> to vector<1x8xf32>
    %cst_9 = arith.constant dense<0xFF800000> : vector<1x8xf32>
    %6 = vector.multi_reduction <maximumf>, %4, %cst_9 [2] : vector<1x8x256xf32> to vector<1x8xf32>
    %c0_10 = arith.constant 0 : index
    %c8 = arith.constant 8 : index
    %c0_11 = arith.constant 0 : index
    %7 = vector.load %arg1[%c0_10, %c8, %c0_11] : memref<1x32x256xf32, #tpu.memory_space<vmem>>, vector<1x8x256xf32>
    %cst_12 = arith.constant dense<0.000000e+00> : vector<1x8xf32>
    %8 = vector.multi_reduction <add>, %7, %cst_12 [2] : vector<1x8x256xf32> to vector<1x8xf32>
    %cst_13 = arith.constant dense<0xFF800000> : vector<1x8xf32>
    %9 = vector.multi_reduction <maximumf>, %7, %cst_13 [2] : vector<1x8x256xf32> to vector<1x8xf32>
    %c0_14 = arith.constant 0 : index
    %c16 = arith.constant 16 : index
    %c0_15 = arith.constant 0 : index
    %10 = vector.load %arg1[%c0_14, %c16, %c0_15] : memref<1x32x256xf32, #tpu.memory_space<vmem>>, vector<1x8x256xf32>
    %cst_16 = arith.constant dense<0.000000e+00> : vector<1x8xf32>
    %11 = vector.multi_reduction <add>, %10, %cst_16 [2] : vector<1x8x256xf32> to vector<1x8xf32>
    %cst_17 = arith.constant dense<0xFF800000> : vector<1x8xf32>
    %12 = vector.multi_reduction <maximumf>, %10, %cst_17 [2] : vector<1x8x256xf32> to vector<1x8xf32>
    %c0_18 = arith.constant 0 : index
    %c24 = arith.constant 24 : index
    %c0_19 = arith.constant 0 : index
    %13 = vector.load %arg1[%c0_18, %c24, %c0_19] : memref<1x32x256xf32, #tpu.memory_space<vmem>>, vector<1x8x256xf32>
    %cst_20 = arith.constant dense<0.000000e+00> : vector<1x8xf32>
    %14 = vector.multi_reduction <add>, %13, %cst_20 [2] : vector<1x8x256xf32> to vector<1x8xf32>
    %cst_21 = arith.constant dense<0xFF800000> : vector<1x8xf32>
    %15 = vector.multi_reduction <maximumf>, %13, %cst_21 [2] : vector<1x8x256xf32> to vector<1x8xf32>
    %16 = tpu.concatenate %5, %8, %11, %14 in 1 : vector<1x8xf32>, vector<1x8xf32>, vector<1x8xf32>, vector<1x8xf32> -> vector<1x32xf32>
    %cst_22 = arith.constant 3.906250e-03 : f32
    %17 = vector.broadcast %cst_22 : f32 to vector<1x32xf32>
    %18 = arith.mulf %16, %17 : vector<1x32xf32>
    %19 = tpu.concatenate %6, %9, %12, %15 in 1 : vector<1x8xf32>, vector<1x8xf32>, vector<1x8xf32>, vector<1x8xf32> -> vector<1x32xf32>
    %20 = vector.shape_cast %18 : vector<1x32xf32> to vector<1x1x32xf32>
    %21 = vector.shape_cast %19 : vector<1x32xf32> to vector<1x1x32xf32>
    %22 = tpu.concatenate %20, %21 in 0 : vector<1x1x32xf32>, vector<1x1x32xf32> -> vector<2x1x32xf32>
    %cst_23 = arith.constant 2.000000e+00 : f32
    %23 = vector.broadcast %cst_23 : f32 to vector<1x32xf32>
    %24 = arith.mulf %23, %2 : vector<1x32xf32>
    %cst_24 = arith.constant 0.000000e+00 : f32
    %25 = vector.broadcast %cst_24 : f32 to vector<1x32xf32>
    %26 = arith.addf %24, %25 : vector<1x32xf32>
    %27 = vector.extract_strided_slice %0 {offsets = [0, 0], sizes = [1, 32], strides = [1, 1]} : vector<2x32xf32> to vector<1x32xf32>
    %28 = vector.shape_cast %27 : vector<1x32xf32> to vector<1x1x32xf32>
    %29 = vector.broadcast %28 : vector<1x1x32xf32> to vector<2x1x32xf32>
    %30 = arith.mulf %22, %29 : vector<2x1x32xf32>
    %cst_25 = arith.constant dense<0.000000e+00> : vector<2x1xf32>
    %31 = vector.multi_reduction <add>, %30, %cst_25 [2] : vector<2x1x32xf32> to vector<2x1xf32>
    %32 = vector.shape_cast %31 : vector<2x1xf32> to vector<2x1x1xf32>
    %c0_26 = arith.constant 0 : index
    %33 = memref.load %arg6[%c0_26] : memref<2xf32, #tpu.memory_space<smem>>
    %34 = vector.broadcast %33 : f32 to vector<2x1x1xf32>
    %35 = arith.addf %32, %34 : vector<2x1x1xf32>
    %36 = vector.extract_strided_slice %35 {offsets = [0, 0, 0], sizes = [1, 1, 1], strides = [1, 1, 1]} : vector<2x1x1xf32> to vector<1x1x1xf32>
    %37 = vector.shape_cast %36 : vector<1x1x1xf32> to vector<1x1xf32>
    %cst_27 = arith.constant 0.000000e+00 : f32
    %38 = vector.broadcast %cst_27 : f32 to vector<1x1xf32>
    %39 = arith.maximumf %37, %38 : vector<1x1xf32>
    %40 = vector.extract_strided_slice %35 {offsets = [1, 0, 0], sizes = [1, 1, 1], strides = [1, 1, 1]} : vector<2x1x1xf32> to vector<1x1x1xf32>
    %41 = vector.shape_cast %40 : vector<1x1x1xf32> to vector<1x1xf32>
    %cst_28 = arith.constant 0.000000e+00 : f32
    %42 = vector.broadcast %cst_28 : f32 to vector<1x1xf32>
    %43 = arith.maximumf %41, %42 : vector<1x1xf32>
    %44 = arith.addf %39, %43 : vector<1x1xf32>
    %45 = vector.extract_strided_slice %1 {offsets = [0, 0], sizes = [1, 32], strides = [1, 1]} : vector<2x32xf32> to vector<1x32xf32>
    %46 = vector.broadcast %44 : vector<1x1xf32> to vector<1x32xf32>
    %47 = arith.mulf %46, %45 : vector<1x32xf32>
    %48 = arith.addf %26, %47 : vector<1x32xf32>
    %49 = vector.extract_strided_slice %0 {offsets = [1, 0], sizes = [1, 32], strides = [1, 1]} : vector<2x32xf32> to vector<1x32xf32>
    %50 = vector.shape_cast %49 : vector<1x32xf32> to vector<1x1x32xf32>
    %51 = vector.broadcast %50 : vector<1x1x32xf32> to vector<2x1x32xf32>
    %52 = arith.mulf %22, %51 : vector<2x1x32xf32>
    %cst_29 = arith.constant dense<0.000000e+00> : vector<2x1xf32>
    %53 = vector.multi_reduction <add>, %52, %cst_29 [2] : vector<2x1x32xf32> to vector<2x1xf32>
    %54 = vector.shape_cast %53 : vector<2x1xf32> to vector<2x1x1xf32>
    %c1 = arith.constant 1 : index
    %55 = memref.load %arg6[%c1] : memref<2xf32, #tpu.memory_space<smem>>
    %56 = vector.broadcast %55 : f32 to vector<2x1x1xf32>
    %57 = arith.addf %54, %56 : vector<2x1x1xf32>
    %58 = vector.extract_strided_slice %57 {offsets = [0, 0, 0], sizes = [1, 1, 1], strides = [1, 1, 1]} : vector<2x1x1xf32> to vector<1x1x1xf32>
    %59 = vector.shape_cast %58 : vector<1x1x1xf32> to vector<1x1xf32>
    %cst_30 = arith.constant 0.000000e+00 : f32
    %60 = vector.broadcast %cst_30 : f32 to vector<1x1xf32>
    %61 = arith.maximumf %59, %60 : vector<1x1xf32>
    %62 = vector.extract_strided_slice %57 {offsets = [1, 0, 0], sizes = [1, 1, 1], strides = [1, 1, 1]} : vector<2x1x1xf32> to vector<1x1x1xf32>
    %63 = vector.shape_cast %62 : vector<1x1x1xf32> to vector<1x1xf32>
    %cst_31 = arith.constant 0.000000e+00 : f32
    %64 = vector.broadcast %cst_31 : f32 to vector<1x1xf32>
    %65 = arith.maximumf %63, %64 : vector<1x1xf32>
    %66 = arith.addf %61, %65 : vector<1x1xf32>
    %67 = vector.extract_strided_slice %1 {offsets = [1, 0], sizes = [1, 32], strides = [1, 1]} : vector<2x32xf32> to vector<1x32xf32>
    %68 = vector.broadcast %66 : vector<1x1xf32> to vector<1x32xf32>
    %69 = arith.mulf %68, %67 : vector<1x32xf32>
    %70 = arith.addf %48, %69 : vector<1x32xf32>
    %cst_32 = arith.constant 0.000000e+00 : f32
    %71 = vector.broadcast %cst_32 : f32 to vector<1x32xf32>
    %72 = arith.subf %71, %70 : vector<1x32xf32>
    %73 = math.exp %72 : vector<1x32xf32>
    %cst_33 = arith.constant 1.000000e+00 : f32
    %74 = vector.broadcast %cst_33 : f32 to vector<1x32xf32>
    %75 = arith.addf %74, %73 : vector<1x32xf32>
    %76 = tpu.reciprocal %75 : vector<1x32xf32> -> vector<1x32xf32>
    %c0_34 = arith.constant 0 : index
    %c0_35 = arith.constant 0 : index
    %c0_36 = arith.constant 0 : index
    %77 = vector.load %arg9[%c0_34, %c0_35, %c0_36] : memref<1x1x32xf32, #tpu.memory_space<vmem>>, vector<1x1x32xf32>
    %78 = vector.shape_cast %77 : vector<1x1x32xf32> to vector<1x32xf32>
    %79 = vector.shape_cast %76 : vector<1x32xf32> to vector<1x1x32xf32>
    tpu.vector_store %arg9[%c0_34, %c0_35, %c0_36], %79 {strides = array<i32>} : memref<1x1x32xf32, #tpu.memory_space<vmem>>, vector<1x1x32xf32>,
    %c0_37 = arith.constant 0 : index
    %c0_38 = arith.constant 0 : index
    %c0_39 = arith.constant 0 : index
    %80 = vector.load %arg1[%c0_37, %c0_38, %c0_39] : memref<1x32x256xf32, #tpu.memory_space<vmem>>, vector<1x8x256xf32>
    %81 = vector.extract_strided_slice %76 {offsets = [0, 0], sizes = [1, 8], strides = [1, 1]} : vector<1x32xf32> to vector<1x8xf32>
    %82 = vector.shape_cast %81 : vector<1x8xf32> to vector<1x8x1xf32>
    %83 = vector.broadcast %82 : vector<1x8x1xf32> to vector<1x8x256xf32>
    %84 = arith.mulf %80, %83 : vector<1x8x256xf32>
    %cst_40 = arith.constant dense<0xFF800000> : vector<1x256xf32>
    %85 = vector.multi_reduction <maximumf>, %84, %cst_40 [1] : vector<1x8x256xf32> to vector<1x256xf32>
    %cst_41 = arith.constant dense<0.000000e+00> : vector<1x256xf32>
    %86 = vector.multi_reduction <add>, %84, %cst_41 [1] : vector<1x8x256xf32> to vector<1x256xf32>
    %c0_42 = arith.constant 0 : index
    %c8_43 = arith.constant 8 : index
    %c0_44 = arith.constant 0 : index
    %87 = vector.load %arg1[%c0_42, %c8_43, %c0_44] : memref<1x32x256xf32, #tpu.memory_space<vmem>>, vector<1x8x256xf32>
    %88 = vector.extract_strided_slice %76 {offsets = [0, 8], sizes = [1, 8], strides = [1, 1]} : vector<1x32xf32> to vector<1x8xf32>
    %89 = vector.shape_cast %88 : vector<1x8xf32> to vector<1x8x1xf32>
    %90 = vector.broadcast %89 : vector<1x8x1xf32> to vector<1x8x256xf32>
    %91 = arith.mulf %87, %90 : vector<1x8x256xf32>
    %cst_45 = arith.constant dense<0xFF800000> : vector<1x256xf32>
    %92 = vector.multi_reduction <maximumf>, %91, %cst_45 [1] : vector<1x8x256xf32> to vector<1x256xf32>
    %cst_46 = arith.constant dense<0.000000e+00> : vector<1x256xf32>
    %93 = vector.multi_reduction <add>, %91, %cst_46 [1] : vector<1x8x256xf32> to vector<1x256xf32>
    %94 = arith.maximumf %85, %92 : vector<1x256xf32>
    %95 = arith.addf %86, %93 : vector<1x256xf32>
    %c0_47 = arith.constant 0 : index
    %c16_48 = arith.constant 16 : index
    %c0_49 = arith.constant 0 : index
    %96 = vector.load %arg1[%c0_47, %c16_48, %c0_49] : memref<1x32x256xf32, #tpu.memory_space<vmem>>, vector<1x8x256xf32>
    %97 = vector.extract_strided_slice %76 {offsets = [0, 16], sizes = [1, 8], strides = [1, 1]} : vector<1x32xf32> to vector<1x8xf32>
    %98 = vector.shape_cast %97 : vector<1x8xf32> to vector<1x8x1xf32>
    %99 = vector.broadcast %98 : vector<1x8x1xf32> to vector<1x8x256xf32>
    %100 = arith.mulf %96, %99 : vector<1x8x256xf32>
    %cst_50 = arith.constant dense<0xFF800000> : vector<1x256xf32>
    %101 = vector.multi_reduction <maximumf>, %100, %cst_50 [1] : vector<1x8x256xf32> to vector<1x256xf32>
    %cst_51 = arith.constant dense<0.000000e+00> : vector<1x256xf32>
    %102 = vector.multi_reduction <add>, %100, %cst_51 [1] : vector<1x8x256xf32> to vector<1x256xf32>
    %103 = arith.maximumf %94, %101 : vector<1x256xf32>
    %104 = arith.addf %95, %102 : vector<1x256xf32>
    %c0_52 = arith.constant 0 : index
    %c24_53 = arith.constant 24 : index
    %c0_54 = arith.constant 0 : index
    %105 = vector.load %arg1[%c0_52, %c24_53, %c0_54] : memref<1x32x256xf32, #tpu.memory_space<vmem>>, vector<1x8x256xf32>
    %106 = vector.extract_strided_slice %76 {offsets = [0, 24], sizes = [1, 8], strides = [1, 1]} : vector<1x32xf32> to vector<1x8xf32>
    %107 = vector.shape_cast %106 : vector<1x8xf32> to vector<1x8x1xf32>
    %108 = vector.broadcast %107 : vector<1x8x1xf32> to vector<1x8x256xf32>
    %109 = arith.mulf %105, %108 : vector<1x8x256xf32>
    %cst_55 = arith.constant dense<0xFF800000> : vector<1x256xf32>
    %110 = vector.multi_reduction <maximumf>, %109, %cst_55 [1] : vector<1x8x256xf32> to vector<1x256xf32>
    %cst_56 = arith.constant dense<0.000000e+00> : vector<1x256xf32>
    %111 = vector.multi_reduction <add>, %109, %cst_56 [1] : vector<1x8x256xf32> to vector<1x256xf32>
    %112 = arith.maximumf %103, %110 : vector<1x256xf32>
    %113 = arith.addf %104, %111 : vector<1x256xf32>
    %cst_57 = arith.constant 3.125000e-02 : f32
    %114 = vector.broadcast %cst_57 : f32 to vector<1x256xf32>
    %115 = arith.mulf %113, %114 : vector<1x256xf32>
    %116 = tpu.concatenate %112, %115 in 0 : vector<1x256xf32>, vector<1x256xf32> -> vector<2x256xf32>
    %cst_58 = arith.constant 0.000000e+00 : f32
    %117 = vector.broadcast %cst_58 : f32 to vector<2x256xf32>
    %cst_59 = arith.constant 0.000000e+00 : f32
    %118 = vector.broadcast %cst_59 : f32 to vector<2x256xf32>
    %c51_i32 = arith.constant 51 : i32
    %119 = tpu.dynamic_rotate %116 by %c51_i32 dim 1 : vector<2x256xf32>, i32 -> vector<2x256xf32>
    %c0_60 = arith.constant 0 : index
    %c0_61 = arith.constant 0 : index
    %c0_62 = arith.constant 0 : index
    %120 = vector.load %arg5[%c0_60, %c0_61, %c0_62] : memref<49x2x256xf32, #tpu.memory_space<vmem>>, vector<1x2x256xf32>
    %121 = vector.shape_cast %120 : vector<1x2x256xf32> to vector<2x256xf32>
    %122 = arith.mulf %119, %121 : vector<2x256xf32>
    %123 = arith.addf %117, %122 : vector<2x256xf32>
    %c50_i32 = arith.constant 50 : i32
    %124 = tpu.dynamic_rotate %116 by %c50_i32 dim 1 : vector<2x256xf32>, i32 -> vector<2x256xf32>
    %c1_63 = arith.constant 1 : index
    %c0_64 = arith.constant 0 : index
    %c0_65 = arith.constant 0 : index
    %125 = vector.load %arg5[%c1_63, %c0_64, %c0_65] : memref<49x2x256xf32, #tpu.memory_space<vmem>>, vector<1x2x256xf32>
    %126 = vector.shape_cast %125 : vector<1x2x256xf32> to vector<2x256xf32>
    %127 = arith.mulf %124, %126 : vector<2x256xf32>
    %128 = arith.addf %118, %127 : vector<2x256xf32>
    %c49_i32 = arith.constant 49 : i32
    %129 = tpu.dynamic_rotate %116 by %c49_i32 dim 1 : vector<2x256xf32>, i32 -> vector<2x256xf32>
    %c2 = arith.constant 2 : index
    %c0_66 = arith.constant 0 : index
    %c0_67 = arith.constant 0 : index
    %130 = vector.load %arg5[%c2, %c0_66, %c0_67] : memref<49x2x256xf32, #tpu.memory_space<vmem>>, vector<1x2x256xf32>
    %131 = vector.shape_cast %130 : vector<1x2x256xf32> to vector<2x256xf32>
    %132 = arith.mulf %129, %131 : vector<2x256xf32>
    %133 = arith.addf %123, %132 : vector<2x256xf32>
    %c48_i32 = arith.constant 48 : i32
    %134 = tpu.dynamic_rotate %116 by %c48_i32 dim 1 : vector<2x256xf32>, i32 -> vector<2x256xf32>
    %c3 = arith.constant 3 : index
    %c0_68 = arith.constant 0 : index
    %c0_69 = arith.constant 0 : index
    %135 = vector.load %arg5[%c3, %c0_68, %c0_69] : memref<49x2x256xf32, #tpu.memory_space<vmem>>, vector<1x2x256xf32>
    %136 = vector.shape_cast %135 : vector<1x2x256xf32> to vector<2x256xf32>
    %137 = arith.mulf %134, %136 : vector<2x256xf32>
    %138 = arith.addf %128, %137 : vector<2x256xf32>
    %c47_i32 = arith.constant 47 : i32
    %139 = tpu.dynamic_rotate %116 by %c47_i32 dim 1 : vector<2x256xf32>, i32 -> vector<2x256xf32>
    %c4 = arith.constant 4 : index
    %c0_70 = arith.constant 0 : index
    %c0_71 = arith.constant 0 : index
    %140 = vector.load %arg5[%c4, %c0_70, %c0_71] : memref<49x2x256xf32, #tpu.memory_space<vmem>>, vector<1x2x256xf32>
    %141 = vector.shape_cast %140 : vector<1x2x256xf32> to vector<2x256xf32>
    %142 = arith.mulf %139, %141 : vector<2x256xf32>
    %143 = arith.addf %133, %142 : vector<2x256xf32>
    %c46_i32 = arith.constant 46 : i32
    %144 = tpu.dynamic_rotate %116 by %c46_i32 dim 1 : vector<2x256xf32>, i32 -> vector<2x256xf32>
    %c5 = arith.constant 5 : index
    %c0_72 = arith.constant 0 : index
    %c0_73 = arith.constant 0 : index
    %145 = vector.load %arg5[%c5, %c0_72, %c0_73] : memref<49x2x256xf32, #tpu.memory_space<vmem>>, vector<1x2x256xf32>
    %146 = vector.shape_cast %145 : vector<1x2x256xf32> to vector<2x256xf32>
    %147 = arith.mulf %144, %146 : vector<2x256xf32>
    %148 = arith.addf %138, %147 : vector<2x256xf32>
    %c45_i32 = arith.constant 45 : i32
    %149 = tpu.dynamic_rotate %116 by %c45_i32 dim 1 : vector<2x256xf32>, i32 -> vector<2x256xf32>
    %c6 = arith.constant 6 : index
    %c0_74 = arith.constant 0 : index
    %c0_75 = arith.constant 0 : index
    %150 = vector.load %arg5[%c6, %c0_74, %c0_75] : memref<49x2x256xf32, #tpu.memory_space<vmem>>, vector<1x2x256xf32>
    %151 = vector.shape_cast %150 : vector<1x2x256xf32> to vector<2x256xf32>
    %152 = arith.mulf %149, %151 : vector<2x256xf32>
    %153 = arith.addf %143, %152 : vector<2x256xf32>
    %c35_i32 = arith.constant 35 : i32
    %154 = tpu.dynamic_rotate %116 by %c35_i32 dim 1 : vector<2x256xf32>, i32 -> vector<2x256xf32>
    %c7 = arith.constant 7 : index
    %c0_76 = arith.constant 0 : index
    %c0_77 = arith.constant 0 : index
    %155 = vector.load %arg5[%c7, %c0_76, %c0_77] : memref<49x2x256xf32, #tpu.memory_space<vmem>>, vector<1x2x256xf32>
    %156 = vector.shape_cast %155 : vector<1x2x256xf32> to vector<2x256xf32>
    %157 = arith.mulf %154, %156 : vector<2x256xf32>
    %158 = arith.addf %148, %157 : vector<2x256xf32>
    %c34_i32 = arith.constant 34 : i32
    %159 = tpu.dynamic_rotate %116 by %c34_i32 dim 1 : vector<2x256xf32>, i32 -> vector<2x256xf32>
    %c8_78 = arith.constant 8 : index
    %c0_79 = arith.constant 0 : index
    %c0_80 = arith.constant 0 : index
    %160 = vector.load %arg5[%c8_78, %c0_79, %c0_80] : memref<49x2x256xf32, #tpu.memory_space<vmem>>, vector<1x2x256xf32>
    %161 = vector.shape_cast %160 : vector<1x2x256xf32> to vector<2x256xf32>
    %162 = arith.mulf %159, %161 : vector<2x256xf32>
    %163 = arith.addf %153, %162 : vector<2x256xf32>
    %c33_i32 = arith.constant 33 : i32
    %164 = tpu.dynamic_rotate %116 by %c33_i32 dim 1 : vector<2x256xf32>, i32 -> vector<2x256xf32>
    %c9 = arith.constant 9 : index
    %c0_81 = arith.constant 0 : index
    %c0_82 = arith.constant 0 : index
    %165 = vector.load %arg5[%c9, %c0_81, %c0_82] : memref<49x2x256xf32, #tpu.memory_space<vmem>>, vector<1x2x256xf32>
    %166 = vector.shape_cast %165 : vector<1x2x256xf32> to vector<2x256xf32>
    %167 = arith.mulf %164, %166 : vector<2x256xf32>
    %168 = arith.addf %158, %167 : vector<2x256xf32>
    %c32_i32 = arith.constant 32 : i32
    %169 = tpu.dynamic_rotate %116 by %c32_i32 dim 1 : vector<2x256xf32>, i32 -> vector<2x256xf32>
    %c10 = arith.constant 10 : index
    %c0_83 = arith.constant 0 : index
    %c0_84 = arith.constant 0 : index
    %170 = vector.load %arg5[%c10, %c0_83, %c0_84] : memref<49x2x256xf32, #tpu.memory_space<vmem>>, vector<1x2x256xf32>
    %171 = vector.shape_cast %170 : vector<1x2x256xf32> to vector<2x256xf32>
    %172 = arith.mulf %169, %171 : vector<2x256xf32>
    %173 = arith.addf %163, %172 : vector<2x256xf32>
    %c31_i32 = arith.constant 31 : i32
    %174 = tpu.dynamic_rotate %116 by %c31_i32 dim 1 : vector<2x256xf32>, i32 -> vector<2x256xf32>
    %c11 = arith.constant 11 : index
    %c0_85 = arith.constant 0 : index
    %c0_86 = arith.constant 0 : index
    %175 = vector.load %arg5[%c11, %c0_85, %c0_86] : memref<49x2x256xf32, #tpu.memory_space<vmem>>, vector<1x2x256xf32>
    %176 = vector.shape_cast %175 : vector<1x2x256xf32> to vector<2x256xf32>
    %177 = arith.mulf %174, %176 : vector<2x256xf32>
    %178 = arith.addf %168, %177 : vector<2x256xf32>
    %c30_i32 = arith.constant 30 : i32
    %179 = tpu.dynamic_rotate %116 by %c30_i32 dim 1 : vector<2x256xf32>, i32 -> vector<2x256xf32>
    %c12 = arith.constant 12 : index
    %c0_87 = arith.constant 0 : index
    %c0_88 = arith.constant 0 : index
    %180 = vector.load %arg5[%c12, %c0_87, %c0_88] : memref<49x2x256xf32, #tpu.memory_space<vmem>>, vector<1x2x256xf32>
    %181 = vector.shape_cast %180 : vector<1x2x256xf32> to vector<2x256xf32>
    %182 = arith.mulf %179, %181 : vector<2x256xf32>
    %183 = arith.addf %173, %182 : vector<2x256xf32>
    %c29_i32 = arith.constant 29 : i32
    %184 = tpu.dynamic_rotate %116 by %c29_i32 dim 1 : vector<2x256xf32>, i32 -> vector<2x256xf32>
    %c13 = arith.constant 13 : index
    %c0_89 = arith.constant 0 : index
    %c0_90 = arith.constant 0 : index
    %185 = vector.load %arg5[%c13, %c0_89, %c0_90] : memref<49x2x256xf32, #tpu.memory_space<vmem>>, vector<1x2x256xf32>
    %186 = vector.shape_cast %185 : vector<1x2x256xf32> to vector<2x256xf32>
    %187 = arith.mulf %184, %186 : vector<2x256xf32>
    %188 = arith.addf %178, %187 : vector<2x256xf32>
    %c19_i32 = arith.constant 19 : i32
    %189 = tpu.dynamic_rotate %116 by %c19_i32 dim 1 : vector<2x256xf32>, i32 -> vector<2x256xf32>
    %c14 = arith.constant 14 : index
    %c0_91 = arith.constant 0 : index
    %c0_92 = arith.constant 0 : index
    %190 = vector.load %arg5[%c14, %c0_91, %c0_92] : memref<49x2x256xf32, #tpu.memory_space<vmem>>, vector<1x2x256xf32>
    %191 = vector.shape_cast %190 : vector<1x2x256xf32> to vector<2x256xf32>
    %192 = arith.mulf %189, %191 : vector<2x256xf32>
    %193 = arith.addf %183, %192 : vector<2x256xf32>
    %c18_i32 = arith.constant 18 : i32
    %194 = tpu.dynamic_rotate %116 by %c18_i32 dim 1 : vector<2x256xf32>, i32 -> vector<2x256xf32>
    %c15 = arith.constant 15 : index
    %c0_93 = arith.constant 0 : index
    %c0_94 = arith.constant 0 : index
    %195 = vector.load %arg5[%c15, %c0_93, %c0_94] : memref<49x2x256xf32, #tpu.memory_space<vmem>>, vector<1x2x256xf32>
    %196 = vector.shape_cast %195 : vector<1x2x256xf32> to vector<2x256xf32>
    %197 = arith.mulf %194, %196 : vector<2x256xf32>
    %198 = arith.addf %188, %197 : vector<2x256xf32>
    %c17_i32 = arith.constant 17 : i32
    %199 = tpu.dynamic_rotate %116 by %c17_i32 dim 1 : vector<2x256xf32>, i32 -> vector<2x256xf32>
    %c16_95 = arith.constant 16 : index
    %c0_96 = arith.constant 0 : index
    %c0_97 = arith.constant 0 : index
    %200 = vector.load %arg5[%c16_95, %c0_96, %c0_97] : memref<49x2x256xf32, #tpu.memory_space<vmem>>, vector<1x2x256xf32>
    %201 = vector.shape_cast %200 : vector<1x2x256xf32> to vector<2x256xf32>
    %202 = arith.mulf %199, %201 : vector<2x256xf32>
    %203 = arith.addf %193, %202 : vector<2x256xf32>
    %c16_i32 = arith.constant 16 : i32
    %204 = tpu.dynamic_rotate %116 by %c16_i32 dim 1 : vector<2x256xf32>, i32 -> vector<2x256xf32>
    %c17 = arith.constant 17 : index
    %c0_98 = arith.constant 0 : index
    %c0_99 = arith.constant 0 : index
    %205 = vector.load %arg5[%c17, %c0_98, %c0_99] : memref<49x2x256xf32, #tpu.memory_space<vmem>>, vector<1x2x256xf32>
    %206 = vector.shape_cast %205 : vector<1x2x256xf32> to vector<2x256xf32>
    %207 = arith.mulf %204, %206 : vector<2x256xf32>
    %208 = arith.addf %198, %207 : vector<2x256xf32>
    %c15_i32 = arith.constant 15 : i32
    %209 = tpu.dynamic_rotate %116 by %c15_i32 dim 1 : vector<2x256xf32>, i32 -> vector<2x256xf32>
    %c18 = arith.constant 18 : index
    %c0_100 = arith.constant 0 : index
    %c0_101 = arith.constant 0 : index
    %210 = vector.load %arg5[%c18, %c0_100, %c0_101] : memref<49x2x256xf32, #tpu.memory_space<vmem>>, vector<1x2x256xf32>
    %211 = vector.shape_cast %210 : vector<1x2x256xf32> to vector<2x256xf32>
    %212 = arith.mulf %209, %211 : vector<2x256xf32>
    %213 = arith.addf %203, %212 : vector<2x256xf32>
    %c14_i32 = arith.constant 14 : i32
    %214 = tpu.dynamic_rotate %116 by %c14_i32 dim 1 : vector<2x256xf32>, i32 -> vector<2x256xf32>
    %c19 = arith.constant 19 : index
    %c0_102 = arith.constant 0 : index
    %c0_103 = arith.constant 0 : index
    %215 = vector.load %arg5[%c19, %c0_102, %c0_103] : memref<49x2x256xf32, #tpu.memory_space<vmem>>, vector<1x2x256xf32>
    %216 = vector.shape_cast %215 : vector<1x2x256xf32> to vector<2x256xf32>
    %217 = arith.mulf %214, %216 : vector<2x256xf32>
    %218 = arith.addf %208, %217 : vector<2x256xf32>
    %c13_i32 = arith.constant 13 : i32
    %219 = tpu.dynamic_rotate %116 by %c13_i32 dim 1 : vector<2x256xf32>, i32 -> vector<2x256xf32>
    %c20 = arith.constant 20 : index
    %c0_104 = arith.constant 0 : index
    %c0_105 = arith.constant 0 : index
    %220 = vector.load %arg5[%c20, %c0_104, %c0_105] : memref<49x2x256xf32, #tpu.memory_space<vmem>>, vector<1x2x256xf32>
    %221 = vector.shape_cast %220 : vector<1x2x256xf32> to vector<2x256xf32>
    %222 = arith.mulf %219, %221 : vector<2x256xf32>
    %223 = arith.addf %213, %222 : vector<2x256xf32>
    %c3_i32 = arith.constant 3 : i32
    %224 = tpu.dynamic_rotate %116 by %c3_i32 dim 1 : vector<2x256xf32>, i32 -> vector<2x256xf32>
    %c21 = arith.constant 21 : index
    %c0_106 = arith.constant 0 : index
    %c0_107 = arith.constant 0 : index
    %225 = vector.load %arg5[%c21, %c0_106, %c0_107] : memref<49x2x256xf32, #tpu.memory_space<vmem>>, vector<1x2x256xf32>
    %226 = vector.shape_cast %225 : vector<1x2x256xf32> to vector<2x256xf32>
    %227 = arith.mulf %224, %226 : vector<2x256xf32>
    %228 = arith.addf %218, %227 : vector<2x256xf32>
    %c2_i32 = arith.constant 2 : i32
    %229 = tpu.dynamic_rotate %116 by %c2_i32 dim 1 : vector<2x256xf32>, i32 -> vector<2x256xf32>
    %c22 = arith.constant 22 : index
    %c0_108 = arith.constant 0 : index
    %c0_109 = arith.constant 0 : index
    %230 = vector.load %arg5[%c22, %c0_108, %c0_109] : memref<49x2x256xf32, #tpu.memory_space<vmem>>, vector<1x2x256xf32>
    %231 = vector.shape_cast %230 : vector<1x2x256xf32> to vector<2x256xf32>
    %232 = arith.mulf %229, %231 : vector<2x256xf32>
    %233 = arith.addf %223, %232 : vector<2x256xf32>
    %c1_i32 = arith.constant 1 : i32
    %234 = tpu.dynamic_rotate %116 by %c1_i32 dim 1 : vector<2x256xf32>, i32 -> vector<2x256xf32>
    %c23 = arith.constant 23 : index
    %c0_110 = arith.constant 0 : index
    %c0_111 = arith.constant 0 : index
    %235 = vector.load %arg5[%c23, %c0_110, %c0_111] : memref<49x2x256xf32, #tpu.memory_space<vmem>>, vector<1x2x256xf32>
    %236 = vector.shape_cast %235 : vector<1x2x256xf32> to vector<2x256xf32>
    %237 = arith.mulf %234, %236 : vector<2x256xf32>
    %238 = arith.addf %228, %237 : vector<2x256xf32>
    %c24_112 = arith.constant 24 : index
    %c0_113 = arith.constant 0 : index
    %c0_114 = arith.constant 0 : index
    %239 = vector.load %arg5[%c24_112, %c0_113, %c0_114] : memref<49x2x256xf32, #tpu.memory_space<vmem>>, vector<1x2x256xf32>
    %240 = vector.shape_cast %239 : vector<1x2x256xf32> to vector<2x256xf32>
    %241 = arith.mulf %116, %240 : vector<2x256xf32>
    %242 = arith.addf %233, %241 : vector<2x256xf32>
    %c255_i32 = arith.constant 255 : i32
    %243 = tpu.dynamic_rotate %116 by %c255_i32 dim 1 : vector<2x256xf32>, i32 -> vector<2x256xf32>
    %c25 = arith.constant 25 : index
    %c0_115 = arith.constant 0 : index
    %c0_116 = arith.constant 0 : index
    %244 = vector.load %arg5[%c25, %c0_115, %c0_116] : memref<49x2x256xf32, #tpu.memory_space<vmem>>, vector<1x2x256xf32>
    %245 = vector.shape_cast %244 : vector<1x2x256xf32> to vector<2x256xf32>
    %246 = arith.mulf %243, %245 : vector<2x256xf32>
    %247 = arith.addf %238, %246 : vector<2x256xf32>
    %c254_i32 = arith.constant 254 : i32
    %248 = tpu.dynamic_rotate %116 by %c254_i32 dim 1 : vector<2x256xf32>, i32 -> vector<2x256xf32>
    %c26 = arith.constant 26 : index
    %c0_117 = arith.constant 0 : index
    %c0_118 = arith.constant 0 : index
    %249 = vector.load %arg5[%c26, %c0_117, %c0_118] : memref<49x2x256xf32, #tpu.memory_space<vmem>>, vector<1x2x256xf32>
    %250 = vector.shape_cast %249 : vector<1x2x256xf32> to vector<2x256xf32>
    %251 = arith.mulf %248, %250 : vector<2x256xf32>
    %252 = arith.addf %242, %251 : vector<2x256xf32>
    %c253_i32 = arith.constant 253 : i32
    %253 = tpu.dynamic_rotate %116 by %c253_i32 dim 1 : vector<2x256xf32>, i32 -> vector<2x256xf32>
    %c27 = arith.constant 27 : index
    %c0_119 = arith.constant 0 : index
    %c0_120 = arith.constant 0 : index
    %254 = vector.load %arg5[%c27, %c0_119, %c0_120] : memref<49x2x256xf32, #tpu.memory_space<vmem>>, vector<1x2x256xf32>
    %255 = vector.shape_cast %254 : vector<1x2x256xf32> to vector<2x256xf32>
    %256 = arith.mulf %253, %255 : vector<2x256xf32>
    %257 = arith.addf %247, %256 : vector<2x256xf32>
    %c243_i32 = arith.constant 243 : i32
    %258 = tpu.dynamic_rotate %116 by %c243_i32 dim 1 : vector<2x256xf32>, i32 -> vector<2x256xf32>
    %c28 = arith.constant 28 : index
    %c0_121 = arith.constant 0 : index
    %c0_122 = arith.constant 0 : index
    %259 = vector.load %arg5[%c28, %c0_121, %c0_122] : memref<49x2x256xf32, #tpu.memory_space<vmem>>, vector<1x2x256xf32>
    %260 = vector.shape_cast %259 : vector<1x2x256xf32> to vector<2x256xf32>
    %261 = arith.mulf %258, %260 : vector<2x256xf32>
    %262 = arith.addf %252, %261 : vector<2x256xf32>
    %c242_i32 = arith.constant 242 : i32
    %263 = tpu.dynamic_rotate %116 by %c242_i32 dim 1 : vector<2x256xf32>, i32 -> vector<2x256xf32>
    %c29 = arith.constant 29 : index
    %c0_123 = arith.constant 0 : index
    %c0_124 = arith.constant 0 : index
    %264 = vector.load %arg5[%c29, %c0_123, %c0_124] : memref<49x2x256xf32, #tpu.memory_space<vmem>>, vector<1x2x256xf32>
    %265 = vector.shape_cast %264 : vector<1x2x256xf32> to vector<2x256xf32>
    %266 = arith.mulf %263, %265 : vector<2x256xf32>
    %267 = arith.addf %257, %266 : vector<2x256xf32>
    %c241_i32 = arith.constant 241 : i32
    %268 = tpu.dynamic_rotate %116 by %c241_i32 dim 1 : vector<2x256xf32>, i32 -> vector<2x256xf32>
    %c30 = arith.constant 30 : index
    %c0_125 = arith.constant 0 : index
    %c0_126 = arith.constant 0 : index
    %269 = vector.load %arg5[%c30, %c0_125, %c0_126] : memref<49x2x256xf32, #tpu.memory_space<vmem>>, vector<1x2x256xf32>
    %270 = vector.shape_cast %269 : vector<1x2x256xf32> to vector<2x256xf32>
    %271 = arith.mulf %268, %270 : vector<2x256xf32>
    %272 = arith.addf %262, %271 : vector<2x256xf32>
    %c240_i32 = arith.constant 240 : i32
    %273 = tpu.dynamic_rotate %116 by %c240_i32 dim 1 : vector<2x256xf32>, i32 -> vector<2x256xf32>
    %c31 = arith.constant 31 : index
    %c0_127 = arith.constant 0 : index
    %c0_128 = arith.constant 0 : index
    %274 = vector.load %arg5[%c31, %c0_127, %c0_128] : memref<49x2x256xf32, #tpu.memory_space<vmem>>, vector<1x2x256xf32>
    %275 = vector.shape_cast %274 : vector<1x2x256xf32> to vector<2x256xf32>
    %276 = arith.mulf %273, %275 : vector<2x256xf32>
    %277 = arith.addf %267, %276 : vector<2x256xf32>
    %c239_i32 = arith.constant 239 : i32
    %278 = tpu.dynamic_rotate %116 by %c239_i32 dim 1 : vector<2x256xf32>, i32 -> vector<2x256xf32>
    %c32 = arith.constant 32 : index
    %c0_129 = arith.constant 0 : index
    %c0_130 = arith.constant 0 : index
    %279 = vector.load %arg5[%c32, %c0_129, %c0_130] : memref<49x2x256xf32, #tpu.memory_space<vmem>>, vector<1x2x256xf32>
    %280 = vector.shape_cast %279 : vector<1x2x256xf32> to vector<2x256xf32>
    %281 = arith.mulf %278, %280 : vector<2x256xf32>
    %282 = arith.addf %272, %281 : vector<2x256xf32>
    %c238_i32 = arith.constant 238 : i32
    %283 = tpu.dynamic_rotate %116 by %c238_i32 dim 1 : vector<2x256xf32>, i32 -> vector<2x256xf32>
    %c33 = arith.constant 33 : index
    %c0_131 = arith.constant 0 : index
    %c0_132 = arith.constant 0 : index
    %284 = vector.load %arg5[%c33, %c0_131, %c0_132] : memref<49x2x256xf32, #tpu.memory_space<vmem>>, vector<1x2x256xf32>
    %285 = vector.shape_cast %284 : vector<1x2x256xf32> to vector<2x256xf32>
    %286 = arith.mulf %283, %285 : vector<2x256xf32>
    %287 = arith.addf %277, %286 : vector<2x256xf32>
    %c237_i32 = arith.constant 237 : i32
    %288 = tpu.dynamic_rotate %116 by %c237_i32 dim 1 : vector<2x256xf32>, i32 -> vector<2x256xf32>
    %c34 = arith.constant 34 : index
    %c0_133 = arith.constant 0 : index
    %c0_134 = arith.constant 0 : index
    %289 = vector.load %arg5[%c34, %c0_133, %c0_134] : memref<49x2x256xf32, #tpu.memory_space<vmem>>, vector<1x2x256xf32>
    %290 = vector.shape_cast %289 : vector<1x2x256xf32> to vector<2x256xf32>
    %291 = arith.mulf %288, %290 : vector<2x256xf32>
    %292 = arith.addf %282, %291 : vector<2x256xf32>
    %c227_i32 = arith.constant 227 : i32
    %293 = tpu.dynamic_rotate %116 by %c227_i32 dim 1 : vector<2x256xf32>, i32 -> vector<2x256xf32>
    %c35 = arith.constant 35 : index
    %c0_135 = arith.constant 0 : index
    %c0_136 = arith.constant 0 : index
    %294 = vector.load %arg5[%c35, %c0_135, %c0_136] : memref<49x2x256xf32, #tpu.memory_space<vmem>>, vector<1x2x256xf32>
    %295 = vector.shape_cast %294 : vector<1x2x256xf32> to vector<2x256xf32>
    %296 = arith.mulf %293, %295 : vector<2x256xf32>
    %297 = arith.addf %287, %296 : vector<2x256xf32>
    %c226_i32 = arith.constant 226 : i32
    %298 = tpu.dynamic_rotate %116 by %c226_i32 dim 1 : vector<2x256xf32>, i32 -> vector<2x256xf32>
    %c36 = arith.constant 36 : index
    %c0_137 = arith.constant 0 : index
    %c0_138 = arith.constant 0 : index
    %299 = vector.load %arg5[%c36, %c0_137, %c0_138] : memref<49x2x256xf32, #tpu.memory_space<vmem>>, vector<1x2x256xf32>
    %300 = vector.shape_cast %299 : vector<1x2x256xf32> to vector<2x256xf32>
    %301 = arith.mulf %298, %300 : vector<2x256xf32>
    %302 = arith.addf %292, %301 : vector<2x256xf32>
    %c225_i32 = arith.constant 225 : i32
    %303 = tpu.dynamic_rotate %116 by %c225_i32 dim 1 : vector<2x256xf32>, i32 -> vector<2x256xf32>
    %c37 = arith.constant 37 : index
    %c0_139 = arith.constant 0 : index
    %c0_140 = arith.constant 0 : index
    %304 = vector.load %arg5[%c37, %c0_139, %c0_140] : memref<49x2x256xf32, #tpu.memory_space<vmem>>, vector<1x2x256xf32>
    %305 = vector.shape_cast %304 : vector<1x2x256xf32> to vector<2x256xf32>
    %306 = arith.mulf %303, %305 : vector<2x256xf32>
    %307 = arith.addf %297, %306 : vector<2x256xf32>
    %c224_i32 = arith.constant 224 : i32
    %308 = tpu.dynamic_rotate %116 by %c224_i32 dim 1 : vector<2x256xf32>, i32 -> vector<2x256xf32>
    %c38 = arith.constant 38 : index
    %c0_141 = arith.constant 0 : index
    %c0_142 = arith.constant 0 : index
    %309 = vector.load %arg5[%c38, %c0_141, %c0_142] : memref<49x2x256xf32, #tpu.memory_space<vmem>>, vector<1x2x256xf32>
    %310 = vector.shape_cast %309 : vector<1x2x256xf32> to vector<2x256xf32>
    %311 = arith.mulf %308, %310 : vector<2x256xf32>
    %312 = arith.addf %302, %311 : vector<2x256xf32>
    %c223_i32 = arith.constant 223 : i32
    %313 = tpu.dynamic_rotate %116 by %c223_i32 dim 1 : vector<2x256xf32>, i32 -> vector<2x256xf32>
    %c39 = arith.constant 39 : index
    %c0_143 = arith.constant 0 : index
    %c0_144 = arith.constant 0 : index
    %314 = vector.load %arg5[%c39, %c0_143, %c0_144] : memref<49x2x256xf32, #tpu.memory_space<vmem>>, vector<1x2x256xf32>
    %315 = vector.shape_cast %314 : vector<1x2x256xf32> to vector<2x256xf32>
    %316 = arith.mulf %313, %315 : vector<2x256xf32>
    %317 = arith.addf %307, %316 : vector<2x256xf32>
    %c222_i32 = arith.constant 222 : i32
    %318 = tpu.dynamic_rotate %116 by %c222_i32 dim 1 : vector<2x256xf32>, i32 -> vector<2x256xf32>
    %c40 = arith.constant 40 : index
    %c0_145 = arith.constant 0 : index
    %c0_146 = arith.constant 0 : index
    %319 = vector.load %arg5[%c40, %c0_145, %c0_146] : memref<49x2x256xf32, #tpu.memory_space<vmem>>, vector<1x2x256xf32>
    %320 = vector.shape_cast %319 : vector<1x2x256xf32> to vector<2x256xf32>
    %321 = arith.mulf %318, %320 : vector<2x256xf32>
    %322 = arith.addf %312, %321 : vector<2x256xf32>
    %c221_i32 = arith.constant 221 : i32
    %323 = tpu.dynamic_rotate %116 by %c221_i32 dim 1 : vector<2x256xf32>, i32 -> vector<2x256xf32>
    %c41 = arith.constant 41 : index
    %c0_147 = arith.constant 0 : index
    %c0_148 = arith.constant 0 : index
    %324 = vector.load %arg5[%c41, %c0_147, %c0_148] : memref<49x2x256xf32, #tpu.memory_space<vmem>>, vector<1x2x256xf32>
    %325 = vector.shape_cast %324 : vector<1x2x256xf32> to vector<2x256xf32>
    %326 = arith.mulf %323, %325 : vector<2x256xf32>
    %327 = arith.addf %317, %326 : vector<2x256xf32>
    %c211_i32 = arith.constant 211 : i32
    %328 = tpu.dynamic_rotate %116 by %c211_i32 dim 1 : vector<2x256xf32>, i32 -> vector<2x256xf32>
    %c42 = arith.constant 42 : index
    %c0_149 = arith.constant 0 : index
    %c0_150 = arith.constant 0 : index
    %329 = vector.load %arg5[%c42, %c0_149, %c0_150] : memref<49x2x256xf32, #tpu.memory_space<vmem>>, vector<1x2x256xf32>
    %330 = vector.shape_cast %329 : vector<1x2x256xf32> to vector<2x256xf32>
    %331 = arith.mulf %328, %330 : vector<2x256xf32>
    %332 = arith.addf %322, %331 : vector<2x256xf32>
    %c210_i32 = arith.constant 210 : i32
    %333 = tpu.dynamic_rotate %116 by %c210_i32 dim 1 : vector<2x256xf32>, i32 -> vector<2x256xf32>
    %c43 = arith.constant 43 : index
    %c0_151 = arith.constant 0 : index
    %c0_152 = arith.constant 0 : index
    %334 = vector.load %arg5[%c43, %c0_151, %c0_152] : memref<49x2x256xf32, #tpu.memory_space<vmem>>, vector<1x2x256xf32>
    %335 = vector.shape_cast %334 : vector<1x2x256xf32> to vector<2x256xf32>
    %336 = arith.mulf %333, %335 : vector<2x256xf32>
    %337 = arith.addf %327, %336 : vector<2x256xf32>
    %c209_i32 = arith.constant 209 : i32
    %338 = tpu.dynamic_rotate %116 by %c209_i32 dim 1 : vector<2x256xf32>, i32 -> vector<2x256xf32>
    %c44 = arith.constant 44 : index
    %c0_153 = arith.constant 0 : index
    %c0_154 = arith.constant 0 : index
    %339 = vector.load %arg5[%c44, %c0_153, %c0_154] : memref<49x2x256xf32, #tpu.memory_space<vmem>>, vector<1x2x256xf32>
    %340 = vector.shape_cast %339 : vector<1x2x256xf32> to vector<2x256xf32>
    %341 = arith.mulf %338, %340 : vector<2x256xf32>
    %342 = arith.addf %332, %341 : vector<2x256xf32>
    %c208_i32 = arith.constant 208 : i32
    %343 = tpu.dynamic_rotate %116 by %c208_i32 dim 1 : vector<2x256xf32>, i32 -> vector<2x256xf32>
    %c45 = arith.constant 45 : index
    %c0_155 = arith.constant 0 : index
    %c0_156 = arith.constant 0 : index
    %344 = vector.load %arg5[%c45, %c0_155, %c0_156] : memref<49x2x256xf32, #tpu.memory_space<vmem>>, vector<1x2x256xf32>
    %345 = vector.shape_cast %344 : vector<1x2x256xf32> to vector<2x256xf32>
    %346 = arith.mulf %343, %345 : vector<2x256xf32>
    %347 = arith.addf %337, %346 : vector<2x256xf32>
    %c207_i32 = arith.constant 207 : i32
    %348 = tpu.dynamic_rotate %116 by %c207_i32 dim 1 : vector<2x256xf32>, i32 -> vector<2x256xf32>
    %c46 = arith.constant 46 : index
    %c0_157 = arith.constant 0 : index
    %c0_158 = arith.constant 0 : index
    %349 = vector.load %arg5[%c46, %c0_157, %c0_158] : memref<49x2x256xf32, #tpu.memory_space<vmem>>, vector<1x2x256xf32>
    %350 = vector.shape_cast %349 : vector<1x2x256xf32> to vector<2x256xf32>
    %351 = arith.mulf %348, %350 : vector<2x256xf32>
    %352 = arith.addf %342, %351 : vector<2x256xf32>
    %c206_i32 = arith.constant 206 : i32
    %353 = tpu.dynamic_rotate %116 by %c206_i32 dim 1 : vector<2x256xf32>, i32 -> vector<2x256xf32>
    %c47 = arith.constant 47 : index
    %c0_159 = arith.constant 0 : index
    %c0_160 = arith.constant 0 : index
    %354 = vector.load %arg5[%c47, %c0_159, %c0_160] : memref<49x2x256xf32, #tpu.memory_space<vmem>>, vector<1x2x256xf32>
    %355 = vector.shape_cast %354 : vector<1x2x256xf32> to vector<2x256xf32>
    %356 = arith.mulf %353, %355 : vector<2x256xf32>
    %357 = arith.addf %347, %356 : vector<2x256xf32>
    %c205_i32 = arith.constant 205 : i32
    %358 = tpu.dynamic_rotate %116 by %c205_i32 dim 1 : vector<2x256xf32>, i32 -> vector<2x256xf32>
    %c48 = arith.constant 48 : index
    %c0_161 = arith.constant 0 : index
    %c0_162 = arith.constant 0 : index
    %359 = vector.load %arg5[%c48, %c0_161, %c0_162] : memref<49x2x256xf32, #tpu.memory_space<vmem>>, vector<1x2x256xf32>
    %360 = vector.shape_cast %359 : vector<1x2x256xf32> to vector<2x256xf32>
    %361 = arith.mulf %358, %360 : vector<2x256xf32>
    %362 = arith.addf %352, %361 : vector<2x256xf32>
    %363 = arith.addf %362, %357 : vector<2x256xf32>
    %364 = vector.extract_strided_slice %363 {offsets = [0, 0], sizes = [1, 256], strides = [1, 1]} : vector<2x256xf32> to vector<1x256xf32>
    %365 = vector.extract_strided_slice %363 {offsets = [1, 0], sizes = [1, 256], strides = [1, 1]} : vector<2x256xf32> to vector<1x256xf32>
    %366 = arith.addf %364, %365 : vector<1x256xf32>
    %367 = vector.broadcast %3 : f32 to vector<1x256xf32>
    %368 = arith.addf %366, %367 : vector<1x256xf32>
    %cst_163 = arith.constant 0.000000e+00 : f32
    %369 = vector.broadcast %cst_163 : f32 to vector<1x256xf32>
    %370 = arith.subf %369, %368 : vector<1x256xf32>
    %371 = math.exp %370 : vector<1x256xf32>
    %cst_164 = arith.constant 1.000000e+00 : f32
    %372 = vector.broadcast %cst_164 : f32 to vector<1x256xf32>
    %373 = arith.addf %372, %371 : vector<1x256xf32>
    %374 = tpu.reciprocal %373 : vector<1x256xf32> -> vector<1x256xf32>
    %c0_165 = arith.constant 0 : index
    %c0_166 = arith.constant 0 : index
    %c0_167 = arith.constant 0 : index
    %375 = vector.load %arg10[%c0_165, %c0_166, %c0_167] : memref<1x1x256xf32, #tpu.memory_space<vmem>>, vector<1x1x256xf32>
    %376 = vector.shape_cast %375 : vector<1x1x256xf32> to vector<1x256xf32>
    %377 = vector.shape_cast %374 : vector<1x256xf32> to vector<1x1x256xf32>
    tpu.vector_store %arg10[%c0_165, %c0_166, %c0_167], %377 {strides = array<i32>} : memref<1x1x256xf32, #tpu.memory_space<vmem>>, vector<1x1x256xf32>,
    %378 = vector.shape_cast %374 : vector<1x256xf32> to vector<1x1x256xf32>
    %c0_168 = arith.constant 0 : index
    %c0_169 = arith.constant 0 : index
    %c0_170 = arith.constant 0 : index
    %379 = vector.load %arg1[%c0_168, %c0_169, %c0_170] : memref<1x32x256xf32, #tpu.memory_space<vmem>>, vector<1x8x256xf32>
    %380 = vector.extract_strided_slice %76 {offsets = [0, 0], sizes = [1, 8], strides = [1, 1]} : vector<1x32xf32> to vector<1x8xf32>
    %381 = vector.shape_cast %380 : vector<1x8xf32> to vector<1x8x1xf32>
    %382 = vector.broadcast %381 : vector<1x8x1xf32> to vector<1x8x256xf32>
    %383 = arith.mulf %379, %382 : vector<1x8x256xf32>
    %384 = vector.broadcast %378 : vector<1x1x256xf32> to vector<1x8x256xf32>
    %385 = arith.mulf %383, %384 : vector<1x8x256xf32>
    %c0_171 = arith.constant 0 : index
    %c0_172 = arith.constant 0 : index
    %c0_173 = arith.constant 0 : index
    %386 = vector.load %arg8[%c0_171, %c0_172, %c0_173] : memref<1x32x256xf32, #tpu.memory_space<vmem>>, vector<1x8x256xf32>
    tpu.vector_store %arg8[%c0_171, %c0_172, %c0_173], %385 {strides = array<i32>} : memref<1x32x256xf32, #tpu.memory_space<vmem>>, vector<1x8x256xf32>,
    %c0_174 = arith.constant 0 : index
    %c8_175 = arith.constant 8 : index
    %c0_176 = arith.constant 0 : index
    %387 = vector.load %arg1[%c0_174, %c8_175, %c0_176] : memref<1x32x256xf32, #tpu.memory_space<vmem>>, vector<1x8x256xf32>
    %388 = vector.extract_strided_slice %76 {offsets = [0, 8], sizes = [1, 8], strides = [1, 1]} : vector<1x32xf32> to vector<1x8xf32>
    %389 = vector.shape_cast %388 : vector<1x8xf32> to vector<1x8x1xf32>
    %390 = vector.broadcast %389 : vector<1x8x1xf32> to vector<1x8x256xf32>
    %391 = arith.mulf %387, %390 : vector<1x8x256xf32>
    %392 = vector.broadcast %378 : vector<1x1x256xf32> to vector<1x8x256xf32>
    %393 = arith.mulf %391, %392 : vector<1x8x256xf32>
    %c0_177 = arith.constant 0 : index
    %c8_178 = arith.constant 8 : index
    %c0_179 = arith.constant 0 : index
    %394 = vector.load %arg8[%c0_177, %c8_178, %c0_179] : memref<1x32x256xf32, #tpu.memory_space<vmem>>, vector<1x8x256xf32>
    tpu.vector_store %arg8[%c0_177, %c8_178, %c0_179], %393 {strides = array<i32>} : memref<1x32x256xf32, #tpu.memory_space<vmem>>, vector<1x8x256xf32>,
    %c0_180 = arith.constant 0 : index
    %c16_181 = arith.constant 16 : index
    %c0_182 = arith.constant 0 : index
    %395 = vector.load %arg1[%c0_180, %c16_181, %c0_182] : memref<1x32x256xf32, #tpu.memory_space<vmem>>, vector<1x8x256xf32>
    %396 = vector.extract_strided_slice %76 {offsets = [0, 16], sizes = [1, 8], strides = [1, 1]} : vector<1x32xf32> to vector<1x8xf32>
    %397 = vector.shape_cast %396 : vector<1x8xf32> to vector<1x8x1xf32>
    %398 = vector.broadcast %397 : vector<1x8x1xf32> to vector<1x8x256xf32>
    %399 = arith.mulf %395, %398 : vector<1x8x256xf32>
    %400 = vector.broadcast %378 : vector<1x1x256xf32> to vector<1x8x256xf32>
    %401 = arith.mulf %399, %400 : vector<1x8x256xf32>
    %c0_183 = arith.constant 0 : index
    %c16_184 = arith.constant 16 : index
    %c0_185 = arith.constant 0 : index
    %402 = vector.load %arg8[%c0_183, %c16_184, %c0_185] : memref<1x32x256xf32, #tpu.memory_space<vmem>>, vector<1x8x256xf32>
    tpu.vector_store %arg8[%c0_183, %c16_184, %c0_185], %401 {strides = array<i32>} : memref<1x32x256xf32, #tpu.memory_space<vmem>>, vector<1x8x256xf32>,
    %c0_186 = arith.constant 0 : index
    %c24_187 = arith.constant 24 : index
    %c0_188 = arith.constant 0 : index
    %403 = vector.load %arg1[%c0_186, %c24_187, %c0_188] : memref<1x32x256xf32, #tpu.memory_space<vmem>>, vector<1x8x256xf32>
    %404 = vector.extract_strided_slice %76 {offsets = [0, 24], sizes = [1, 8], strides = [1, 1]} : vector<1x32xf32> to vector<1x8xf32>
    %405 = vector.shape_cast %404 : vector<1x8xf32> to vector<1x8x1xf32>
    %406 = vector.broadcast %405 : vector<1x8x1xf32> to vector<1x8x256xf32>
    %407 = arith.mulf %403, %406 : vector<1x8x256xf32>
    %408 = vector.broadcast %378 : vector<1x1x256xf32> to vector<1x8x256xf32>
    %409 = arith.mulf %407, %408 : vector<1x8x256xf32>
    %c0_189 = arith.constant 0 : index
    %c24_190 = arith.constant 24 : index
    %c0_191 = arith.constant 0 : index
    %410 = vector.load %arg8[%c0_189, %c24_190, %c0_191] : memref<1x32x256xf32, #tpu.memory_space<vmem>>, vector<1x8x256xf32>
    tpu.vector_store %arg8[%c0_189, %c24_190, %c0_191], %409 {strides = array<i32>} : memref<1x32x256xf32, #tpu.memory_space<vmem>>, vector<1x8x256xf32>,
    return
  }
  func.func @transform_0(%arg0: i32) -> (i32, i32, i32) {
    %c0_i32 = arith.constant 0 : i32
    %c0_i32_0 = arith.constant 0 : i32
    %c0_i32_1 = arith.constant 0 : i32
    return %arg0, %c0_i32, %c0_i32_0 : i32, i32, i32
  }
  func.func @transform_1(%arg0: i32) -> (i32, i32) {
    %c0_i32 = arith.constant 0 : i32
    %c0_i32_0 = arith.constant 0 : i32
    %c0_i32_1 = arith.constant 0 : i32
    return %c0_i32, %c0_i32_0 : i32, i32
  }
  func.func @transform_2(%arg0: i32) -> (i32, i32) {
    %c0_i32 = arith.constant 0 : i32
    %c0_i32_0 = arith.constant 0 : i32
    %c0_i32_1 = arith.constant 0 : i32
    return %c0_i32, %c0_i32_0 : i32, i32
  }
  func.func @transform_3(%arg0: i32) -> (i32, i32) {
    %c0_i32 = arith.constant 0 : i32
    %c0_i32_0 = arith.constant 0 : i32
    %c0_i32_1 = arith.constant 0 : i32
    return %c0_i32, %c0_i32_0 : i32, i32
  }
  func.func @transform_4(%arg0: i32) -> (i32, i32, i32) {
    %c0_i32 = arith.constant 0 : i32
    %c0_i32_0 = arith.constant 0 : i32
    %c0_i32_1 = arith.constant 0 : i32
    %c0_i32_2 = arith.constant 0 : i32
    return %c0_i32, %c0_i32_0, %c0_i32_1 : i32, i32, i32
  }
  func.func @transform_5(%arg0: i32) -> i32 {
    %c0_i32 = arith.constant 0 : i32
    %c0_i32_0 = arith.constant 0 : i32
    return %c0_i32 : i32
  }
  func.func @transform_6(%arg0: i32) -> i32 {
    %c0_i32 = arith.constant 0 : i32
    %c0_i32_0 = arith.constant 0 : i32
    return %c0_i32 : i32
  }
  func.func @transform_7(%arg0: i32) -> (i32, i32, i32) {
    %c0_i32 = arith.constant 0 : i32
    %c0_i32_0 = arith.constant 0 : i32
    %c0_i32_1 = arith.constant 0 : i32
    return %arg0, %c0_i32, %c0_i32_0 : i32, i32, i32
  }
  func.func @transform_8(%arg0: i32) -> (i32, i32, i32) {
    %c0_i32 = arith.constant 0 : i32
    %c0_i32_0 = arith.constant 0 : i32
    %c0_i32_1 = arith.constant 0 : i32
    return %arg0, %c0_i32, %c0_i32_0 : i32, i32, i32
  }
  func.func @transform_9(%arg0: i32) -> (i32, i32, i32) {
    %c0_i32 = arith.constant 0 : i32
    %c0_i32_0 = arith.constant 0 : i32
    %c0_i32_1 = arith.constant 0 : i32
    return %arg0, %c0_i32, %c0_i32_0 : i32, i32, i32
  }
}

</mosaic_0001>

<llo_original>
// kernel: tpu_custom_call.1
$region0: #{tpu_custom_call.1}
  #allocation0 [shape = 'u32[]', space=smem, size = 0x4, offset = 0x4, fixed_abs, tag = 'smem constant byte address 0x4 - core index']
  #allocation1 [shape = 'u32[144,128]{1,0:T(1,128)}', space=vmem, size = 0x12000, scoped, tag = 'internal scratch']
  #allocation2 [shape = 'f32[1]{0:T(128)S(6)}', space=smem, size = 0x200, scoped, tag = 'scoped memory for tpu_custom_call.1']
  %s0 = inlined_call_operand.hbm [shape: f32[2,32,256], index: 0, kind: input, shape index: {}]
  %s1 = inlined_call_operand.vmem [shape: f32[2,32], index: 1, kind: input, shape index: {}]
  %s2 = inlined_call_operand.vmem [shape: f32[2,32], index: 2, kind: input, shape index: {}]
  %s3 = inlined_call_operand.vmem [shape: f32[1,32], index: 3, kind: input, shape index: {}]
  %s4 = inlined_call_operand.hbm [shape: f32[49,2,256], index: 4, kind: input, shape index: {}]
  %s5 = inlined_call_operand.vmem [shape: f32[2], index: 5, kind: input, shape index: {}]
  %s6 = inlined_call_operand.<no memory space> [shape: f32[1], index: 6, kind: input, shape index: {}]
  %s7 = inlined_call_operand.hbm [shape: f32[2,32,256], index: 7, kind: output, shape index: {0}]
  %s8 = inlined_call_operand.hbm [shape: f32[2,1,32], index: 8, kind: output, shape index: {1}]
  %s9 = inlined_call_operand.hbm [shape: f32[2,1,256], index: 9, kind: output, shape index: {2}]
  %10 = xla_tuple %s7, %s8, %s9
  %s11 = sld [smem:[#allocation0]]
  $region89: #{tpu_custom_call.1} parent=0
    _
  %s13 = ssub.s32 1, %s11
  %s14 = scalar_select 0, %s13, %s11
  %15 = sst [smem:[#allocation2]] %s6
  $region1: #{tpu_custom_call.1} parent=0
    #allocation3 [shape = 'u8[65536]{0}', space=vmem, size = 0x10000, scoped, tag = 'input window, operand 0']
    #allocation4 [shape = 's32[2]{0}', space=sflag, size = 0x8, scoped, tag = 'scoped memory for tpu_custom_call.1']
    #allocation5 [shape = 's32[2]{0}', space=sflag, size = 0x8, scoped, tag = 'scoped memory for tpu_custom_call.1']
    #allocation6 [shape = 's32[2]{0}', space=sflag, size = 0x8, scoped, tag = 'scoped memory for tpu_custom_call.1']
    #allocation7 [shape = 'u8[100352]{0}', space=vmem, size = 0x18800, scoped, tag = 'input window, operand 4, single buffered']
    #allocation8 [shape = 's32[1]{0}', space=sflag, size = 0x4, scoped, tag = 'scoped memory for tpu_custom_call.1']
    #allocation9 [shape = 'u8[512]{0}', space=smem, size = 0x200, scoped, tag = 'input window, operand 5, single buffered']
    #allocation10 [shape = 'u8[65536]{0}', space=vmem, size = 0x10000, scoped, tag = 'output window, operand 0']
    #allocation11 [shape = 'u8[1024]{0}', space=vmem, size = 0x400, scoped, tag = 'output window, operand 1']
    #allocation12 [shape = 's32[2]{0}', space=sflag, size = 0x8, scoped, tag = 'scoped memory for tpu_custom_call.1']
    #allocation13 [shape = 'u8[2048]{0}', space=vmem, size = 0x800, scoped, tag = 'output window, operand 2']
    %16 = vsyncpa [#allocation4], 0
    %s17 = scalar_lea.sflag [#allocation4], 1
    %18 = vsyncpa %s17, 0
    %19 = vsyncpa [#allocation8], 0
    %20 = vsyncpa [#allocation6], 0
    %21 = vsyncpa [#allocation5], 0
    %s22 = scalar_lea.sflag [#allocation5], 1
    %23 = vsyncpa %s22, 0
    %24 = vsyncpa [#allocation12], 0
    %s25 = scalar_lea.sflag [#allocation12], 1
    %26 = vsyncpa %s25, 0
    loop: start=0, step=1, limit=4
    $region2: #{tpu_custom_call.1} parent=1 // loop_pre_header
      _
    $region3: #{tpu_custom_call.1} parent=1 // loop_header
      %s28 = sphi 0, %s32
      %p29 = scmp.ge.s32.totalorder %s28, 4
      %s38 = sphi 0, %s40
      %s41 = sphi 0, %s38
      %s42 = sphi 0, %s41
      %s58 = sphi 0, %s42
      %s62 = sphi 0, %s62
      %s64 = sphi 0, %s62
      %s65 = sphi 0, %s64
      %s79 = sphi 0, %s65
      %s83 = sphi 0, %s83
      %s85 = sphi 0, %s83
      %s86 = sphi 0, %s85
      %s100 = sphi 0, %s86
      %s104 = sphi 0, %s104
      %s106 = sphi 0, %s104
      %s107 = sphi 0, %s106
      %s121 = sphi 0, %s107
      %s125 = sphi 0, %s125
      %s127 = sphi 0, %s125
      %s128 = sphi 0, %s127
      %s142 = sphi 0, %s128
      %s146 = sphi 0, %s146
      %s148 = sphi 0, %s146
      %s149 = sphi 0, %s148
      %s163 = sphi 0, %s149
      %s167 = sphi 0, %s167
      %s169 = sphi 0, %s167
      %s170 = sphi 0, %s169
      %s184 = sphi 0, %s170
      %s190 = sphi 0, %s192
      %s193 = sphi 0, %s190
      %s194 = sphi 0, %s193
      %s210 = sphi 0, %s194
      %s216 = sphi 0, %s218
      %s219 = sphi 0, %s216
      %s220 = sphi 0, %s219
      %s236 = sphi 0, %s220
      %s242 = sphi 0, %s244
      %s245 = sphi 0, %s242
      %s246 = sphi 0, %s245
      %s262 = sphi 0, %s246
    $region4: #{tpu_custom_call.1} parent=1 // loop_header_branch
      %31 = sbr.rel (%p29) target = $region8
    $region5: #{tpu_custom_call.1} parent=1 // loop_body
      %s33 = ssub.s32 %s28, 1
      %s34 = ssub.s32 %s28, 2
      %s35 = sadd.s32 %s28, 1
      %s36 = ssub.s32 %s28, %s35
      %p37 = scmp.eq.s32.totalorder %s36, 0
      %s39 = sadd.s32 %s38, 1
      %s40 = scalar_select %p37, %s38, %s39
      %p43 = pneg %p37
      %p44 = scmp.eq.s32.totalorder %s28, 1
      %p45 = por %p43, %p44
      %p46 = scmp.ne.s32.totalorder %s38, %s41
      %p47 = scmp.eq.s32.totalorder %s28, 0
      %p48 = por %p46, %p47
      %p49 = scmp.ne.s32.totalorder %s38, %s41
      %p50 = scmp.eq.s32.totalorder %s33, 1
      %p51 = por %p49, %p50
      %p52 = scmp.ne.s32.totalorder %s41, %s42
      %p53 = scmp.eq.s32.totalorder %s33, 0
      %p54 = por %p52, %p53
      %p55 = scmp.ne.s32.totalorder %s41, %s42
      %p56 = scmp.eq.s32.totalorder %s34, 1
      %p57 = por %p55, %p56
      %p59 = scmp.ne.s32.totalorder %s42, %s58
      %p60 = scmp.eq.s32.totalorder %s34, 0
      %p61 = por %p59, %p60
      %s63 = sadd.s32 %s62, 1
      %p66 = scmp.eq.s32.totalorder %s28, 1
      %p67 = scmp.ne.s32.totalorder %s62, %s64
      %p68 = scmp.eq.s32.totalorder %s28, 0
      %p69 = por %p67, %p68
      %p70 = scmp.ne.s32.totalorder %s62, %s64
      %p71 = scmp.eq.s32.totalorder %s33, 1
      %p72 = por %p70, %p71
      %p73 = scmp.ne.s32.totalorder %s64, %s65
      %p74 = scmp.eq.s32.totalorder %s33, 0
      %p75 = por %p73, %p74
      %p76 = scmp.ne.s32.totalorder %s64, %s65
      %p77 = scmp.eq.s32.totalorder %s34, 1
      %p78 = por %p76, %p77
      %p80 = scmp.ne.s32.totalorder %s65, %s79
      %p81 = scmp.eq.s32.totalorder %s34, 0
      %p82 = por %p80, %p81
      %s84 = sadd.s32 %s83, 1
      %p87 = scmp.eq.s32.totalorder %s28, 1
      %p88 = scmp.ne.s32.totalorder %s83, %s85
      %p89 = scmp.eq.s32.totalorder %s28, 0
      %p90 = por %p88, %p89
      %p91 = scmp.ne.s32.totalorder %s83, %s85
      %p92 = scmp.eq.s32.totalorder %s33, 1
      %p93 = por %p91, %p92
      %p94 = scmp.ne.s32.totalorder %s85, %s86
      %p95 = scmp.eq.s32.totalorder %s33, 0
      %p96 = por %p94, %p95
      %p97 = scmp.ne.s32.totalorder %s85, %s86
      %p98 = scmp.eq.s32.totalorder %s34, 1
      %p99 = por %p97, %p98
      %p101 = scmp.ne.s32.totalorder %s86, %s100
      %p102 = scmp.eq.s32.totalorder %s34, 0
      %p103 = por %p101, %p102
      %s105 = sadd.s32 %s104, 1
      %p108 = scmp.eq.s32.totalorder %s28, 1
      %p109 = scmp.ne.s32.totalorder %s104, %s106
      %p110 = scmp.eq.s32.totalorder %s28, 0
      %p111 = por %p109, %p110
      %p112 = scmp.ne.s32.totalorder %s104, %s106
      %p113 = scmp.eq.s32.totalorder %s33, 1
      %p114 = por %p112, %p113
      %p115 = scmp.ne.s32.totalorder %s106, %s107
      %p116 = scmp.eq.s32.totalorder %s33, 0
      %p117 = por %p115, %p116
      %p118 = scmp.ne.s32.totalorder %s106, %s107
      %p119 = scmp.eq.s32.totalorder %s34, 1
      %p120 = por %p118, %p119
      %p122 = scmp.ne.s32.totalorder %s107, %s121
      %p123 = scmp.eq.s32.totalorder %s34, 0
      %p124 = por %p122, %p123
      %s126 = sadd.s32 %s125, 1
      %p129 = scmp.eq.s32.totalorder %s28, 1
      %p130 = scmp.ne.s32.totalorder %s125, %s127
      %p131 = scmp.eq.s32.totalorder %s28, 0
      %p132 = por %p130, %p131
      %p133 = scmp.ne.s32.totalorder %s125, %s127
      %p134 = scmp.eq.s32.totalorder %s33, 1
      %p135 = por %p133, %p134
      %p136 = scmp.ne.s32.totalorder %s127, %s128
      %p137 = scmp.eq.s32.totalorder %s33, 0
      %p138 = por %p136, %p137
      %p139 = scmp.ne.s32.totalorder %s127, %s128
      %p140 = scmp.eq.s32.totalorder %s34, 1
      %p141 = por %p139, %p140
      %p143 = scmp.ne.s32.totalorder %s128, %s142
      %p144 = scmp.eq.s32.totalorder %s34, 0
      %p145 = por %p143, %p144
      %s147 = sadd.s32 %s146, 1
      %p150 = scmp.eq.s32.totalorder %s28, 1
      %p151 = scmp.ne.s32.totalorder %s146, %s148
      %p152 = scmp.eq.s32.totalorder %s28, 0
      %p153 = por %p151, %p152
      %p154 = scmp.ne.s32.totalorder %s146, %s148
      %p155 = scmp.eq.s32.totalorder %s33, 1
      %p156 = por %p154, %p155
      %p157 = scmp.ne.s32.totalorder %s148, %s149
      %p158 = scmp.eq.s32.totalorder %s33, 0
      %p159 = por %p157, %p158
      %p160 = scmp.ne.s32.totalorder %s148, %s149
      %p161 = scmp.eq.s32.totalorder %s34, 1
      %p162 = por %p160, %p161
      %p164 = scmp.ne.s32.totalorder %s149, %s163
      %p165 = scmp.eq.s32.totalorder %s34, 0
      %p166 = por %p164, %p165
      %s168 = sadd.s32 %s167, 1
      %p171 = scmp.eq.s32.totalorder %s28, 1
      %p172 = scmp.ne.s32.totalorder %s167, %s169
      %p173 = scmp.eq.s32.totalorder %s28, 0
      %p174 = por %p172, %p173
      %p175 = scmp.ne.s32.totalorder %s167, %s169
      %p176 = scmp.eq.s32.totalorder %s33, 1
      %p177 = por %p175, %p176
      %p178 = scmp.ne.s32.totalorder %s169, %s170
      %p179 = scmp.eq.s32.totalorder %s33, 0
      %p180 = por %p178, %p179
      %p181 = scmp.ne.s32.totalorder %s169, %s170
      %p182 = scmp.eq.s32.totalorder %s34, 1
      %p183 = por %p181, %p182
      %p185 = scmp.ne.s32.totalorder %s170, %s184
      %p186 = scmp.eq.s32.totalorder %s34, 0
      %p187 = por %p185, %p186
      %s188 = ssub.s32 %s28, %s35
      %p189 = scmp.eq.s32.totalorder %s188, 0
      %s191 = sadd.s32 %s190, 1
      %s192 = scalar_select %p189, %s190, %s191
      %p195 = pneg %p189
      %p196 = scmp.eq.s32.totalorder %s28, 1
      %p197 = por %p195, %p196
      %p198 = scmp.ne.s32.totalorder %s190, %s193
      %p199 = scmp.eq.s32.totalorder %s28, 0
      %p200 = por %p198, %p199
      %p201 = scmp.ne.s32.totalorder %s190, %s193
      %p202 = scmp.eq.s32.totalorder %s33, 1
      %p203 = por %p201, %p202
      %p204 = scmp.ne.s32.totalorder %s193, %s194
      %p205 = scmp.eq.s32.totalorder %s33, 0
      %p206 = por %p204, %p205
      %p207 = scmp.ne.s32.totalorder %s193, %s194
      %p208 = scmp.eq.s32.totalorder %s34, 1
      %p209 = por %p207, %p208
      %p211 = scmp.ne.s32.totalorder %s194, %s210
      %p212 = scmp.eq.s32.totalorder %s34, 0
      %p213 = por %p211, %p212
      %s214 = ssub.s32 %s28, %s35
      %p215 = scmp.eq.s32.totalorder %s214, 0
      %s217 = sadd.s32 %s216, 1
      %s218 = scalar_select %p215, %s216, %s217
      %p221 = pneg %p215
      %p222 = scmp.eq.s32.totalorder %s28, 1
      %p223 = por %p221, %p222
      %p224 = scmp.ne.s32.totalorder %s216, %s219
      %p225 = scmp.eq.s32.totalorder %s28, 0
      %p226 = por %p224, %p225
      %p227 = scmp.ne.s32.totalorder %s216, %s219
      %p228 = scmp.eq.s32.totalorder %s33, 1
      %p229 = por %p227, %p228
      %p230 = scmp.ne.s32.totalorder %s219, %s220
      %p231 = scmp.eq.s32.totalorder %s33, 0
      %p232 = por %p230, %p231
      %p233 = scmp.ne.s32.totalorder %s219, %s220
      %p234 = scmp.eq.s32.totalorder %s34, 1
      %p235 = por %p233, %p234
      %p237 = scmp.ne.s32.totalorder %s220, %s236
      %p238 = scmp.eq.s32.totalorder %s34, 0
      %p239 = por %p237, %p238
      %s240 = ssub.s32 %s28, %s35
      %p241 = scmp.eq.s32.totalorder %s240, 0
      %s243 = sadd.s32 %s242, 1
      %s244 = scalar_select %p241, %s242, %s243
      %p247 = pneg %p241
      %p248 = scmp.eq.s32.totalorder %s28, 1
      %p249 = por %p247, %p248
      %p250 = scmp.ne.s32.totalorder %s242, %s245
      %p251 = scmp.eq.s32.totalorder %s28, 0
      %p252 = por %p250, %p251
      %p253 = scmp.ne.s32.totalorder %s242, %s245
      %p254 = scmp.eq.s32.totalorder %s33, 1
      %p255 = por %p253, %p254
      %p256 = scmp.ne.s32.totalorder %s245, %s246
      %p257 = scmp.eq.s32.totalorder %s33, 0
      %p258 = por %p256, %p257
      %p259 = scmp.ne.s32.totalorder %s245, %s246
      %p260 = scmp.eq.s32.totalorder %s34, 1
      %p261 = por %p259, %p260
      %p263 = scmp.ne.s32.totalorder %s246, %s262
      %p264 = scmp.eq.s32.totalorder %s34, 0
      %p265 = por %p263, %p264
      %p266 = scmp.le.s32.totalorder 1, %s28
      %p267 = scmp.lt.s32.totalorder %s28, 3
      %p268 = pnand %p266, %p267
      %p269 = pneg %p268
      // Predicated region
      $region9: #{tpu_custom_call.1} parent=5 // pred_check
        _
      $region10: #{tpu_custom_call.1} parent=5 // pred_check_branch
        %271 = sbr.rel (%p268) target = $region12
      $region11: #{tpu_custom_call.1} parent=5 // pred_region
        %s272 = ssub.s32 %s28, 1
        // Predicated region
        $region13: #{tpu_custom_call.1} parent=11 // pred_check
          %p273 = pneg %p75
        $region14: #{tpu_custom_call.1} parent=11 // pred_check_branch
          %275 = sbr.rel (%p273) target = $region16
        $region15: #{tpu_custom_call.1} parent=11 // pred_region
          _
        $region16: #{tpu_custom_call.1} parent=11 // pred_fallthru
          _
        // Predicated region
        $region17: #{tpu_custom_call.1} parent=11 // pred_check
          %p276 = pneg %p96
        $region18: #{tpu_custom_call.1} parent=11 // pred_check_branch
          %278 = sbr.rel (%p276) target = $region20
        $region19: #{tpu_custom_call.1} parent=11 // pred_region
          _
        $region20: #{tpu_custom_call.1} parent=11 // pred_fallthru
          _
        // Predicated region
        $region21: #{tpu_custom_call.1} parent=11 // pred_check
          %p279 = pneg %p117
        $region22: #{tpu_custom_call.1} parent=11 // pred_check_branch
          %281 = sbr.rel (%p279) target = $region24
        $region23: #{tpu_custom_call.1} parent=11 // pred_region
          _
        $region24: #{tpu_custom_call.1} parent=11 // pred_fallthru
          _
        // Predicated region
        $region25: #{tpu_custom_call.1} parent=11 // pred_check
          %p282 = pneg %p138
        $region26: #{tpu_custom_call.1} parent=11 // pred_check_branch
          %284 = sbr.rel (%p282) target = $region28
        $region27: #{tpu_custom_call.1} parent=11 // pred_region
          %s286 = ssub.s32 3136, 3136
          %287 = vsyncadd [#allocation8], %s286
          %s288 = sshll.u32 [#allocation7], 4
          %s289 = int_to_ptr.vmem [resolvable:$true] %s288
          %294 = dma.hbm_to_vmem [thread:$0]  %s4, 3136, %s289, [#allocation8], 64, 64, 4
        $region28: #{tpu_custom_call.1} parent=11 // pred_fallthru
          _
        // Predicated region
        $region29: #{tpu_custom_call.1} parent=11 // pred_check
          %p295 = pneg %p159
        $region30: #{tpu_custom_call.1} parent=11 // pred_check_branch
          %297 = sbr.rel (%p295) target = $region32
        $region31: #{tpu_custom_call.1} parent=11 // pred_region
          %s299 = ssub.s32 16, 16
          %300 = vsyncadd [#allocation6], %s299
          %s302 = sshll.u32 %s5, 4
          %s303 = int_to_ptr.vmem [resolvable:$true] %s302
          %305 = dma.vmem_to_smem %s303, 16, [#allocation9], [#allocation6]
        $region32: #{tpu_custom_call.1} parent=11 // pred_fallthru
          _
        // Predicated region
        $region33: #{tpu_custom_call.1} parent=11 // pred_check
          %p306 = pneg %p180
        $region34: #{tpu_custom_call.1} parent=11 // pred_check_branch
          %308 = sbr.rel (%p306) target = $region36
        $region35: #{tpu_custom_call.1} parent=11 // pred_region
          _
        $region36: #{tpu_custom_call.1} parent=11 // pred_fallthru
          _
      $region12: #{tpu_custom_call.1} parent=5 // pred_fallthru
        _
      %p309 = scmp.lt.s32.totalorder %s28, 2
      // Predicated region
      $region37: #{tpu_custom_call.1} parent=5 // pred_check
        %p310 = pneg %p309
      $region38: #{tpu_custom_call.1} parent=5 // pred_check_branch
        %312 = sbr.rel (%p310) target = $region40
      $region39: #{tpu_custom_call.1} parent=5 // pred_region
        // Predicated region
        $region41: #{tpu_custom_call.1} parent=39 // pred_check
          %p313 = pneg %p48
        $region42: #{tpu_custom_call.1} parent=39 // pred_check_branch
          %315 = sbr.rel (%p313) target = $region44
        $region43: #{tpu_custom_call.1} parent=39 // pred_region
          %s316 = sand.u32 %s38, 1
          %s317 = scalar_lea.sflag [#allocation4], %s316
          %s318 = sand.u32 %s38, 1
          %s319 = smul.addr %s318, 64
          %s320 = scalar_lea.vmem [#allocation3], %s319
          %s322 = ssub.s32 1024, 1024
          %323 = vsyncadd %s317, %s322
          %s324 = smul.addr %s28, 8
          %s325 = smul.addr %s324, 128
          %s326 = scalar_lea.hbm %s0, %s325
          %s327 = sshll.u32 %s320, 4
          %s328 = int_to_ptr.vmem [resolvable:$true] %s327
          %333 = dma.hbm_to_vmem [thread:$0]  %s326, 1024, %s328, %s317, 256, 256, 16
        $region44: #{tpu_custom_call.1} parent=39 // pred_fallthru
          _
      $region40: #{tpu_custom_call.1} parent=5 // pred_fallthru
        _
      %p334 = scmp.le.s32.totalorder 1, %s28
      %p335 = scmp.lt.s32.totalorder %s28, 3
      %p336 = pnand %p334, %p335
      %p337 = pneg %p336
      // Predicated region
      $region45: #{tpu_custom_call.1} parent=5 // pred_check
        _
      $region46: #{tpu_custom_call.1} parent=5 // pred_check_branch
        %339 = sbr.rel (%p336) target = $region48
      $region47: #{tpu_custom_call.1} parent=5 // pred_region
        %s340 = ssub.s32 %s28, 1
        %s341 = sand.u32 %s41, 1
        %s342 = scalar_lea.sflag [#allocation4], %s341
        %s343 = sand.u32 %s41, 1
        %s344 = smul.addr %s343, 64
        %s345 = scalar_lea.vmem [#allocation3], %s344
        // Predicated region
        $region49: #{tpu_custom_call.1} parent=47 // pred_check
          %p346 = pneg %p54
        $region50: #{tpu_custom_call.1} parent=47 // pred_check_branch
          %348 = sbr.rel (%p346) target = $region52
        $region51: #{tpu_custom_call.1} parent=47 // pred_region
          %349 = dma.done %s342, 1024
        $region52: #{tpu_custom_call.1} parent=47 // pred_fallthru
          _
        // Predicated region
        $region53: #{tpu_custom_call.1} parent=47 // pred_check
          %p350 = pneg %p138
        $region54: #{tpu_custom_call.1} parent=47 // pred_check_branch
          %352 = sbr.rel (%p350) target = $region56
        $region55: #{tpu_custom_call.1} parent=47 // pred_region
          %353 = dma.done [#allocation8], 3136
        $region56: #{tpu_custom_call.1} parent=47 // pred_fallthru
          _
        // Predicated region
        $region57: #{tpu_custom_call.1} parent=47 // pred_check
          %p354 = pneg %p159
        $region58: #{tpu_custom_call.1} parent=47 // pred_check_branch
          %356 = sbr.rel (%p354) target = $region60
        $region59: #{tpu_custom_call.1} parent=47 // pred_region
          %357 = dma.done [#allocation6], 16
        $region60: #{tpu_custom_call.1} parent=47 // pred_fallthru
          _
        %358 = sfence
        %s359 = sand.u32 %s41, 1
        %s360 = scalar_lea.sflag [#allocation4], %s359
        %s361 = sand.u32 %s41, 1
        %s362 = smul.addr %s361, 64
        %s363 = scalar_lea.vmem [#allocation3], %s362
        %p364 = pneg %p54
        %p365 = pneg %p51
        %p366 = pneg %p75
        %p367 = pneg %p72
        %p368 = pneg %p96
        %p369 = pneg %p93
        %p370 = pneg %p117
        %p371 = pneg %p114
        %p372 = pneg %p138
        %p373 = pneg %p135
        %p374 = pneg %p159
        %p375 = pneg %p156
        %p376 = pneg %p180
        %p377 = pneg %p177
        %p378 = pneg %p206
        %p379 = pneg %p203
        %s380 = sand.u32 %s193, 1
        %s381 = scalar_lea.sflag [#allocation5], %s380
        %s382 = sand.u32 %s193, 1
        %s383 = smul.addr %s382, 64
        %s384 = scalar_lea.vmem [#allocation10], %s383
        %p385 = pneg %p232
        %p386 = pneg %p229
        %s387 = sand.u32 %s33, 1
        %s388 = scalar_lea.sflag [#allocation12], %s387
        %s389 = sand.u32 %s219, 1
        %s390 = scalar_lea.vmem [#allocation11], %s389
        %p391 = pneg %p258
        %p392 = pneg %p255
        %s393 = sand.u32 %s33, 1
        %s394 = scalar_lea.sflag [#allocation12], %s393
        %s395 = sand.u32 %s245, 1
        %s396 = smul.addr %s395, 2
        %s397 = scalar_lea.vmem [#allocation13], %s396
        %v398 = vld [vmem:[%s1] sm:$0x3]
        %v399 = vld [vmem:[%s2] sm:$0x3]
        %v400 = vld [vmem:[%s3] sm:$0x1]
        %s401 = sld [smem:[#allocation2]]
        %v402 = vld [vmem:[%s345] sm:$0xff]
        %v403 = vld [vmem:[%s345 + $0x8] sm:$0xff]
        %v404 = vadd.f32 %v402, %v403
        %405 = vadd.xlane.f32.xlu0 %v404
        %v406 = vpop.xlane.xlu0 %405
        %v407 = vmax.f32 %v402, %v403
        %408 = vmax.xlane.f32.xlu0 %v407
        %v409 = vpop.xlane.xlu0 %408
        %v410 = vld [vmem:[%s345 + $0x10] sm:$0xff]
        %v411 = vld [vmem:[%s345 + $0x18] sm:$0xff]
        %v412 = vadd.f32 %v410, %v411
        %413 = vadd.xlane.f32.xlu0 %v412
        %v414 = vpop.xlane.xlu0 %413
        %v415 = vmax.f32 %v410, %v411
        %416 = vmax.xlane.f32.xlu0 %v415
        %v417 = vpop.xlane.xlu0 %416
        %v418 = vld [vmem:[%s345 + $0x20] sm:$0xff]
        %v419 = vld [vmem:[%s345 + $0x28] sm:$0xff]
        %v420 = vadd.f32 %v418, %v419
        %421 = vadd.xlane.f32.xlu0 %v420
        %v422 = vpop.xlane.xlu0 %421
        %v423 = vmax.f32 %v418, %v419
        %424 = vmax.xlane.f32.xlu0 %v423
        %v425 = vpop.xlane.xlu0 %424
        %v426 = vld [vmem:[%s345 + $0x30] sm:$0xff]
        %v427 = vld [vmem:[%s345 + $0x38] sm:$0xff]
        %v428 = vadd.f32 %v426, %v427
        %429 = vadd.xlane.f32.xlu0 %v428
        %v430 = vpop.xlane.xlu0 %429
        %v431 = vmax.f32 %v426, %v427
        %432 = vmax.xlane.f32.xlu0 %v431
        %v433 = vpop.xlane.xlu0 %432
        %v435 = vlaneseq
        %v436 = vand.u32 %v435, 127
        %v437 = vlaneseq
        %v438 = vshrl.u32 %v437, 7
        %v439 = vsub.s32 %v436, %v438
        %v440 = vrot.slane %v406, %v439
        %v443 = vadd.s32 %v436, 4294967288
        %v444 = vlaneseq
        %v445 = vshrl.u32 %v444, 7
        %v446 = vsub.s32 %v443, %v445
        %v447 = vrot.slane %v414, %v446
        %v450 = vadd.s32 %v436, 4294967280
        %v451 = vlaneseq
        %v452 = vshrl.u32 %v451, 7
        %v453 = vsub.s32 %v450, %v452
        %v454 = vrot.slane %v422, %v453
        %v457 = vadd.s32 %v436, 4294967272
        %v458 = vlaneseq
        %v459 = vshrl.u32 %v458, 7
        %v460 = vsub.s32 %v457, %v459
        %v461 = vrot.slane %v430, %v460
        %vm463 = vcmask 64512
        %v464 = vsel %vm463, %v440, %v447
        %vm465 = vcmask 130048
        %v466 = vsel %vm465, %v464, %v454
        %vm467 = vcmask 195584
        %v468 = vsel %vm467, %v466, %v461
        %v469 = vmul.f32 %v468, 0.00390625
        %v471 = vlaneseq
        %v472 = vshrl.u32 %v471, 7
        %v473 = vsub.s32 %v436, %v472
        %v474 = vrot.slane %v409, %v473
        %v477 = vlaneseq
        %v478 = vshrl.u32 %v477, 7
        %v479 = vsub.s32 %v443, %v478
        %v480 = vrot.slane %v417, %v479
        %v483 = vlaneseq
        %v484 = vshrl.u32 %v483, 7
        %v485 = vsub.s32 %v450, %v484
        %v486 = vrot.slane %v425, %v485
        %v489 = vlaneseq
        %v490 = vshrl.u32 %v489, 7
        %v491 = vsub.s32 %v457, %v490
        %v492 = vrot.slane %v433, %v491
        %v494 = vsel %vm463, %v474, %v480
        %v495 = vsel %vm465, %v494, %v486
        %v496 = vsel %vm467, %v495, %v492
        %v497 = vmul.f32 %v400, 2.0
        %v498 = vadd.f32 %v497, 0.0
        %v499 = vmul.f32 %v469, %v398
        %v500 = vmul.f32 %v496, %v398
        %vm501 = vcmask 253952
        %v502 = vsel %vm501, %v499, 0.0
        %503 = vadd.xlane.f32.xlu0 %v502
        %v504 = vpop.xlane.xlu0 %503
        %v505 = vsel %vm501, %v500, 0.0
        %506 = vadd.xlane.f32.xlu0 %v505
        %v507 = vpop.xlane.xlu0 %506
        %s508 = sld [smem:[#allocation9]]
        %v509 = vstv %s508
        %v510 = vadd.f32 %v504, %v509
        %v511 = vadd.f32 %v507, %v509
        %v512 = vmax.f32 %v510, 0.0
        %v513 = vmax.f32 %v511, 0.0
        %v514 = vadd.f32 %v512, %v513
        %v515 = vmul.f32 %v514, %v399
        %v516 = vadd.f32 %v498, %v515
        %v518 = vrot.slane %v398, 1
        %v520 = vmul.f32 %v469, %v518
        %v521 = vmul.f32 %v496, %v518
        %v522 = vsel %vm501, %v520, 0.0
        %523 = vadd.xlane.f32.xlu0 %v522
        %v524 = vpop.xlane.xlu0 %523
        %v525 = vsel %vm501, %v521, 0.0
        %526 = vadd.xlane.f32.xlu0 %v525
        %v527 = vpop.xlane.xlu0 %526
        %s528 = sld [smem:[#allocation9 + $0x1]]
        %v529 = vstv %s528
        %v530 = vadd.f32 %v524, %v529
        %v531 = vadd.f32 %v527, %v529
        %v532 = vmax.f32 %v530, 0.0
        %v533 = vmax.f32 %v531, 0.0
        %v534 = vadd.f32 %v532, %v533
        %v536 = vrot.slane %v399, 1
        %v538 = vmul.f32 %v534, %v536
        %v539 = vadd.f32 %v516, %v538
        %v540 = vsub.f32 0.0, %v539
        %v541 = vmul.f32 %v540, 1.442695
        %v542 = vpow.pop %v541
        %v543 = vadd.f32 %v542, 1.0
        %v544 = vrcp.pop %v543
        %545 = vst.msk [vmem:[%s390] sm:$0x1] %vm501, %v544
        %v546 = vld [vmem:[%s345] sm:$0xff]
        %v547 = vld [vmem:[%s345 + $0x8] sm:$0xff]
        %v548 = vlaneseq
        %v549 = vshrl.u32 %v548, 7
        %v550 = vsub.s32 0, %v549
        %v551 = vrot.slane %v544, %v550
        %553 = vbcast.lane.b32.xlu0 %v551, 256
        %v554 = vpop.permute.xlu0 %553
        %v555 = vmul.f32 %v546, %v554
        %v556 = vmul.f32 %v547, %v554
        %v557 = vrot.slane %v555, 4
        %v558 = vmax.f32 %v555, %v557
        %v559 = vrot.slane %v558, 2
        %v560 = vmax.f32 %v558, %v559
        %v561 = vrot.slane %v560, 1
        %v562 = vmax.f32 %v560, %v561
        %v563 = vrot.slane %v556, 4
        %v564 = vmax.f32 %v556, %v563
        %v565 = vrot.slane %v564, 2
        %v566 = vmax.f32 %v564, %v565
        %v567 = vrot.slane %v566, 1
        %v568 = vmax.f32 %v566, %v567
        %v569 = vrot.slane %v555, 4
        %v570 = vadd.f32 %v555, %v569
        %v571 = vrot.slane %v570, 2
        %v572 = vadd.f32 %v570, %v571
        %v573 = vrot.slane %v572, 1
        %v574 = vadd.f32 %v572, %v573
        %v575 = vrot.slane %v556, 4
        %v576 = vadd.f32 %v556, %v575
        %v577 = vrot.slane %v576, 2
        %v578 = vadd.f32 %v576, %v577
        %v579 = vrot.slane %v578, 1
        %v580 = vadd.f32 %v578, %v579
        %v581 = vld [vmem:[%s345 + $0x10] sm:$0xff]
        %v582 = vld [vmem:[%s345 + $0x18] sm:$0xff]
        %s584 = sor.u32 256, 8
        %585 = vbcast.lane.b32.xlu0 %v551, %s584
        %v586 = vpop.permute.xlu0 %585
        %v587 = vmul.f32 %v581, %v586
        %v588 = vmul.f32 %v582, %v586
        %v589 = vrot.slane %v587, 4
        %v590 = vmax.f32 %v587, %v589
        %v591 = vrot.slane %v590, 2
        %v592 = vmax.f32 %v590, %v591
        %v593 = vrot.slane %v592, 1
        %v594 = vmax.f32 %v592, %v593
        %v595 = vrot.slane %v588, 4
        %v596 = vmax.f32 %v588, %v595
        %v597 = vrot.slane %v596, 2
        %v598 = vmax.f32 %v596, %v597
        %v599 = vrot.slane %v598, 1
        %v600 = vmax.f32 %v598, %v599
        %v601 = vrot.slane %v587, 4
        %v602 = vadd.f32 %v587, %v601
        %v603 = vrot.slane %v602, 2
        %v604 = vadd.f32 %v602, %v603
        %v605 = vrot.slane %v604, 1
        %v606 = vadd.f32 %v604, %v605
        %v607 = vrot.slane %v588, 4
        %v608 = vadd.f32 %v588, %v607
        %v609 = vrot.slane %v608, 2
        %v610 = vadd.f32 %v608, %v609
        %v611 = vrot.slane %v610, 1
        %v612 = vadd.f32 %v610, %v611
        %v613 = vmax.f32 %v562, %v594
        %v614 = vmax.f32 %v568, %v600
        %v615 = vadd.f32 %v574, %v606
        %v616 = vadd.f32 %v580, %v612
        %v617 = vld [vmem:[%s345 + $0x20] sm:$0xff]
        %v618 = vld [vmem:[%s345 + $0x28] sm:$0xff]
        %s620 = sor.u32 256, 16
        %621 = vbcast.lane.b32.xlu0 %v551, %s620
        %v622 = vpop.permute.xlu0 %621
        %v623 = vmul.f32 %v617, %v622
        %v624 = vmul.f32 %v618, %v622
        %v625 = vrot.slane %v623, 4
        %v626 = vmax.f32 %v623, %v625
        %v627 = vrot.slane %v626, 2
        %v628 = vmax.f32 %v626, %v627
        %v629 = vrot.slane %v628, 1
        %v630 = vmax.f32 %v628, %v629
        %v631 = vrot.slane %v624, 4
        %v632 = vmax.f32 %v624, %v631
        %v633 = vrot.slane %v632, 2
        %v634 = vmax.f32 %v632, %v633
        %v635 = vrot.slane %v634, 1
        %v636 = vmax.f32 %v634, %v635
        %v637 = vrot.slane %v623, 4
        %v638 = vadd.f32 %v623, %v637
        %v639 = vrot.slane %v638, 2
        %v640 = vadd.f32 %v638, %v639
        %v641 = vrot.slane %v640, 1
        %v642 = vadd.f32 %v640, %v641
        %v643 = vrot.slane %v624, 4
        %v644 = vadd.f32 %v624, %v643
        %v645 = vrot.slane %v644, 2
        %v646 = vadd.f32 %v644, %v645
        %v647 = vrot.slane %v646, 1
        %v648 = vadd.f32 %v646, %v647
        %v649 = vmax.f32 %v613, %v630
        %v650 = vmax.f32 %v614, %v636
        %v651 = vadd.f32 %v615, %v642
        %v652 = vadd.f32 %v616, %v648
        %v653 = vld [vmem:[%s345 + $0x30] sm:$0xff]
        %v654 = vld [vmem:[%s345 + $0x38] sm:$0xff]
        %s656 = sor.u32 256, 24
        %657 = vbcast.lane.b32.xlu0 %v551, %s656
        %v658 = vpop.permute.xlu0 %657
        %v659 = vmul.f32 %v653, %v658
        %v660 = vmul.f32 %v654, %v658
        %v661 = vrot.slane %v659, 4
        %v662 = vmax.f32 %v659, %v661
        %v663 = vrot.slane %v662, 2
        %v664 = vmax.f32 %v662, %v663
        %v665 = vrot.slane %v664, 1
        %v666 = vmax.f32 %v664, %v665
        %v667 = vrot.slane %v660, 4
        %v668 = vmax.f32 %v660, %v667
        %v669 = vrot.slane %v668, 2
        %v670 = vmax.f32 %v668, %v669
        %v671 = vrot.slane %v670, 1
        %v672 = vmax.f32 %v670, %v671
        %v673 = vrot.slane %v659, 4
        %v674 = vadd.f32 %v659, %v673
        %v675 = vrot.slane %v674, 2
        %v676 = vadd.f32 %v674, %v675
        %v677 = vrot.slane %v676, 1
        %v678 = vadd.f32 %v676, %v677
        %v679 = vrot.slane %v660, 4
        %v680 = vadd.f32 %v660, %v679
        %v681 = vrot.slane %v680, 2
        %v682 = vadd.f32 %v680, %v681
        %v683 = vrot.slane %v682, 1
        %v684 = vadd.f32 %v682, %v683
        %v685 = vmax.f32 %v649, %v666
        %v686 = vmax.f32 %v650, %v672
        %v687 = vadd.f32 %v651, %v678
        %v688 = vadd.f32 %v652, %v684
        %v689 = vmul.f32 %v687, 0.03125
        %v690 = vmul.f32 %v688, 0.03125
        %vm691 = vcmask 1040384
        %v692 = vsel %vm691, %v685, %v689
        %v693 = vsel %vm691, %v686, %v690
        %694 = vrot.lane.b32.xlu0 %v692, 51
        %v695 = vpop.permute.xlu0 %694
        %696 = vrot.lane.b32.xlu0 %v693, 51
        %v697 = vpop.permute.xlu0 %696
        %vm698 = vcmp.lt.s32.totalorder %v436, 51
        %v699 = vsel %vm698, %v695, %v697
        %v700 = vsel %vm698, %v697, %v695
        %v701 = vld [vmem:[#allocation7] sm:$0xf]
        %v704 = vunpack.c.l.s4 1983009808
        %v705 = vunpack.c.0.s8 %v704
        %v706 = vlaneseq
        %v707 = vshrl.u32 %v706, 7
        %v708 = vsub.s32 %v705, %v707
        %v709 = vrot.slane %v701, %v708
        %v710 = vcombine.high %v709, %v709
        %v713 = vmul.f32 %v700, %v709
        %v714 = vmul.f32 %v699, %v710
        %v715 = vadd.f32 %v713, 0.0
        %v716 = vadd.f32 %v714, 0.0
        %717 = vrot.lane.b32.xlu0 %v692, 50
        %v718 = vpop.permute.xlu0 %717
        %719 = vrot.lane.b32.xlu0 %v693, 50
        %v720 = vpop.permute.xlu0 %719
        %vm721 = vcmp.lt.s32.totalorder %v436, 50
        %v722 = vsel %vm721, %v718, %v720
        %v723 = vsel %vm721, %v720, %v718
        %s724 = scalar_lea.vmem [#allocation7], 4
        %v725 = vld [vmem:[%s724] sm:$0xf]
        %v728 = vunpack.c.l.s4 1983009808
        %v729 = vunpack.c.0.s8 %v728
        %v730 = vlaneseq
        %v731 = vshrl.u32 %v730, 7
        %v732 = vsub.s32 %v729, %v731
        %v733 = vrot.slane %v725, %v732
        %v734 = vcombine.high %v733, %v733
        %v737 = vmul.f32 %v723, %v733
        %v738 = vmul.f32 %v722, %v734
        %v739 = vadd.f32 %v737, 0.0
        %v740 = vadd.f32 %v738, 0.0
        %741 = vrot.lane.b32.xlu0 %v692, 49
        %v742 = vpop.permute.xlu0 %741
        %743 = vrot.lane.b32.xlu0 %v693, 49
        %v744 = vpop.permute.xlu0 %743
        %vm745 = vcmp.lt.s32.totalorder %v436, 49
        %v746 = vsel %vm745, %v742, %v744
        %v747 = vsel %vm745, %v744, %v742
        %s748 = scalar_lea.vmem [#allocation7], 8
        %v749 = vld [vmem:[%s748] sm:$0xf]
        %v752 = vunpack.c.l.s4 1983009808
        %v753 = vunpack.c.0.s8 %v752
        %v754 = vlaneseq
        %v755 = vshrl.u32 %v754, 7
        %v756 = vsub.s32 %v753, %v755
        %v757 = vrot.slane %v749, %v756
        %v758 = vcombine.high %v757, %v757
        %v761 = vmul.f32 %v747, %v757
        %v762 = vmul.f32 %v746, %v758
        %v763 = vadd.f32 %v715, %v761
        %v764 = vadd.f32 %v716, %v762
        %765 = vrot.lane.b32.xlu0 %v692, 48
        %v766 = vpop.permute.xlu0 %765
        %767 = vrot.lane.b32.xlu0 %v693, 48
        %v768 = vpop.permute.xlu0 %767
        %vm769 = vcmp.lt.s32.totalorder %v436, 48
        %v770 = vsel %vm769, %v766, %v768
        %v771 = vsel %vm769, %v768, %v766
        %s772 = scalar_lea.vmem [#allocation7], 12
        %v773 = vld [vmem:[%s772] sm:$0xf]
        %v776 = vunpack.c.l.s4 1983009808
        %v777 = vunpack.c.0.s8 %v776
        %v778 = vlaneseq
        %v779 = vshrl.u32 %v778, 7
        %v780 = vsub.s32 %v777, %v779
        %v781 = vrot.slane %v773, %v780
        %v782 = vcombine.high %v781, %v781
        %v785 = vmul.f32 %v771, %v781
        %v786 = vmul.f32 %v770, %v782
        %v787 = vadd.f32 %v739, %v785
        %v788 = vadd.f32 %v740, %v786
        %789 = vrot.lane.b32.xlu0 %v692, 47
        %v790 = vpop.permute.xlu0 %789
        %791 = vrot.lane.b32.xlu0 %v693, 47
        %v792 = vpop.permute.xlu0 %791
        %vm793 = vcmp.lt.s32.totalorder %v436, 47
        %v794 = vsel %vm793, %v790, %v792
        %v795 = vsel %vm793, %v792, %v790
        %s796 = scalar_lea.vmem [#allocation7], 16
        %v797 = vld [vmem:[%s796] sm:$0xf]
        %v800 = vunpack.c.l.s4 1983009808
        %v801 = vunpack.c.0.s8 %v800
        %v802 = vlaneseq
        %v803 = vshrl.u32 %v802, 7
        %v804 = vsub.s32 %v801, %v803
        %v805 = vrot.slane %v797, %v804
        %v806 = vcombine.high %v805, %v805
        %v809 = vmul.f32 %v795, %v805
        %v810 = vmul.f32 %v794, %v806
        %v811 = vadd.f32 %v763, %v809
        %v812 = vadd.f32 %v764, %v810
        %813 = vrot.lane.b32.xlu0 %v692, 46
        %v814 = vpop.permute.xlu0 %813
        %815 = vrot.lane.b32.xlu0 %v693, 46
        %v816 = vpop.permute.xlu0 %815
        %vm817 = vcmp.lt.s32.totalorder %v436, 46
        %v818 = vsel %vm817, %v814, %v816
        %v819 = vsel %vm817, %v816, %v814
        %s820 = scalar_lea.vmem [#allocation7], 20
        %v821 = vld [vmem:[%s820] sm:$0xf]
        %v824 = vunpack.c.l.s4 1983009808
        %v825 = vunpack.c.0.s8 %v824
        %v826 = vlaneseq
        %v827 = vshrl.u32 %v826, 7
        %v828 = vsub.s32 %v825, %v827
        %v829 = vrot.slane %v821, %v828
        %v830 = vcombine.high %v829, %v829
        %v833 = vmul.f32 %v819, %v829
        %v834 = vmul.f32 %v818, %v830
        %v835 = vadd.f32 %v787, %v833
        %v836 = vadd.f32 %v788, %v834
        %837 = vrot.lane.b32.xlu0 %v692, 45
        %v838 = vpop.permute.xlu0 %837
        %839 = vrot.lane.b32.xlu0 %v693, 45
        %v840 = vpop.permute.xlu0 %839
        %vm841 = vcmp.lt.s32.totalorder %v436, 45
        %v842 = vsel %vm841, %v838, %v840
        %v843 = vsel %vm841, %v840, %v838
        %s844 = scalar_lea.vmem [#allocation7], 24
        %v845 = vld [vmem:[%s844] sm:$0xf]
        %v848 = vunpack.c.l.s4 1983009808
        %v849 = vunpack.c.0.s8 %v848
        %v850 = vlaneseq
        %v851 = vshrl.u32 %v850, 7
        %v852 = vsub.s32 %v849, %v851
        %v853 = vrot.slane %v845, %v852
        %v854 = vcombine.high %v853, %v853
        %v857 = vmul.f32 %v843, %v853
        %v858 = vmul.f32 %v842, %v854
        %v859 = vadd.f32 %v811, %v857
        %v860 = vadd.f32 %v812, %v858
        %861 = vrot.lane.b32.xlu0 %v692, 35
        %v862 = vpop.permute.xlu0 %861
        %863 = vrot.lane.b32.xlu0 %v693, 35
        %v864 = vpop.permute.xlu0 %863
        %vm865 = vcmp.lt.s32.totalorder %v436, 35
        %v866 = vsel %vm865, %v862, %v864
        %v867 = vsel %vm865, %v864, %v862
        %s868 = scalar_lea.vmem [#allocation7], 28
        %v869 = vld [vmem:[%s868] sm:$0xf]
        %v872 = vunpack.c.l.s4 1983009808
        %v873 = vunpack.c.0.s8 %v872
        %v874 = vlaneseq
        %v875 = vshrl.u32 %v874, 7
        %v876 = vsub.s32 %v873, %v875
        %v877 = vrot.slane %v869, %v876
        %v878 = vcombine.high %v877, %v877
        %v881 = vmul.f32 %v867, %v877
        %v882 = vmul.f32 %v866, %v878
        %v883 = vadd.f32 %v835, %v881
        %v884 = vadd.f32 %v836, %v882
        %885 = vrot.lane.b32.xlu0 %v692, 34
        %v886 = vpop.permute.xlu0 %885
        %887 = vrot.lane.b32.xlu0 %v693, 34
        %v888 = vpop.permute.xlu0 %887
        %vm889 = vcmp.lt.s32.totalorder %v436, 34
        %v890 = vsel %vm889, %v886, %v888
        %v891 = vsel %vm889, %v888, %v886
        %s892 = scalar_lea.vmem [#allocation7], 32
        %v893 = vld [vmem:[%s892] sm:$0xf]
        %v896 = vunpack.c.l.s4 1983009808
        %v897 = vunpack.c.0.s8 %v896
        %v898 = vlaneseq
        %v899 = vshrl.u32 %v898, 7
        %v900 = vsub.s32 %v897, %v899
        %v901 = vrot.slane %v893, %v900
        %v902 = vcombine.high %v901, %v901
        %v905 = vmul.f32 %v891, %v901
        %v906 = vmul.f32 %v890, %v902
        %v907 = vadd.f32 %v859, %v905
        %v908 = vadd.f32 %v860, %v906
        %909 = vrot.lane.b32.xlu0 %v692, 33
        %v910 = vpop.permute.xlu0 %909
        %911 = vrot.lane.b32.xlu0 %v693, 33
        %v912 = vpop.permute.xlu0 %911
        %vm913 = vcmp.lt.s32.totalorder %v436, 33
        %v914 = vsel %vm913, %v910, %v912
        %v915 = vsel %vm913, %v912, %v910
        %s916 = scalar_lea.vmem [#allocation7], 36
        %v917 = vld [vmem:[%s916] sm:$0xf]
        %v920 = vunpack.c.l.s4 1983009808
        %v921 = vunpack.c.0.s8 %v920
        %v922 = vlaneseq
        %v923 = vshrl.u32 %v922, 7
        %v924 = vsub.s32 %v921, %v923
        %v925 = vrot.slane %v917, %v924
        %v926 = vcombine.high %v925, %v925
        %v929 = vmul.f32 %v915, %v925
        %v930 = vmul.f32 %v914, %v926
        %v931 = vadd.f32 %v883, %v929
        %v932 = vadd.f32 %v884, %v930
        %933 = vrot.lane.b32.xlu0 %v692, 32
        %v934 = vpop.permute.xlu0 %933
        %935 = vrot.lane.b32.xlu0 %v693, 32
        %v936 = vpop.permute.xlu0 %935
        %vm937 = vcmp.lt.s32.totalorder %v436, 32
        %v938 = vsel %vm937, %v934, %v936
        %v939 = vsel %vm937, %v936, %v934
        %s940 = scalar_lea.vmem [#allocation7], 40
        %v941 = vld [vmem:[%s940] sm:$0xf]
        %v944 = vunpack.c.l.s4 1983009808
        %v945 = vunpack.c.0.s8 %v944
        %v946 = vlaneseq
        %v947 = vshrl.u32 %v946, 7
        %v948 = vsub.s32 %v945, %v947
        %v949 = vrot.slane %v941, %v948
        %v950 = vcombine.high %v949, %v949
        %v953 = vmul.f32 %v939, %v949
        %v954 = vmul.f32 %v938, %v950
        %v955 = vadd.f32 %v907, %v953
        %v956 = vadd.f32 %v908, %v954
        %957 = vrot.lane.b32.xlu0 %v692, 31
        %v958 = vpop.permute.xlu0 %957
        %959 = vrot.lane.b32.xlu0 %v693, 31
        %v960 = vpop.permute.xlu0 %959
        %vm961 = vcmp.lt.s32.totalorder %v436, 31
        %v962 = vsel %vm961, %v958, %v960
        %v963 = vsel %vm961, %v960, %v958
        %s964 = scalar_lea.vmem [#allocation7], 44
        %v965 = vld [vmem:[%s964] sm:$0xf]
        %v968 = vunpack.c.l.s4 1983009808
        %v969 = vunpack.c.0.s8 %v968
        %v970 = vlaneseq
        %v971 = vshrl.u32 %v970, 7
        %v972 = vsub.s32 %v969, %v971
        %v973 = vrot.slane %v965, %v972
        %v974 = vcombine.high %v973, %v973
        %v977 = vmul.f32 %v963, %v973
        %v978 = vmul.f32 %v962, %v974
        %v979 = vadd.f32 %v931, %v977
        %v980 = vadd.f32 %v932, %v978
        %981 = vrot.lane.b32.xlu0 %v692, 30
        %v982 = vpop.permute.xlu0 %981
        %983 = vrot.lane.b32.xlu0 %v693, 30
        %v984 = vpop.permute.xlu0 %983
        %vm985 = vcmp.lt.s32.totalorder %v436, 30
        %v986 = vsel %vm985, %v982, %v984
        %v987 = vsel %vm985, %v984, %v982
        %s988 = scalar_lea.vmem [#allocation7], 48
        %v989 = vld [vmem:[%s988] sm:$0xf]
        %v992 = vunpack.c.l.s4 1983009808
        %v993 = vunpack.c.0.s8 %v992
        %v994 = vlaneseq
        %v995 = vshrl.u32 %v994, 7
        %v996 = vsub.s32 %v993, %v995
        %v997 = vrot.slane %v989, %v996
        %v998 = vcombine.high %v997, %v997
        %v1001 = vmul.f32 %v987, %v997
        %v1002 = vmul.f32 %v986, %v998
        %v1003 = vadd.f32 %v955, %v1001
        %v1004 = vadd.f32 %v956, %v1002
        %1005 = vrot.lane.b32.xlu0 %v692, 29
        %v1006 = vpop.permute.xlu0 %1005
        %1007 = vrot.lane.b32.xlu0 %v693, 29
        %v1008 = vpop.permute.xlu0 %1007
        %vm1009 = vcmp.lt.s32.totalorder %v436, 29
        %v1010 = vsel %vm1009, %v1006, %v1008
        %v1011 = vsel %vm1009, %v1008, %v1006
        %s1012 = scalar_lea.vmem [#allocation7], 52
        %v1013 = vld [vmem:[%s1012] sm:$0xf]
        %v1016 = vunpack.c.l.s4 1983009808
        %v1017 = vunpack.c.0.s8 %v1016
        %v1018 = vlaneseq
        %v1019 = vshrl.u32 %v1018, 7
        %v1020 = vsub.s32 %v1017, %v1019
        %v1021 = vrot.slane %v1013, %v1020
        %v1022 = vcombine.high %v1021, %v1021
        %v1025 = vmul.f32 %v1011, %v1021
        %v1026 = vmul.f32 %v1010, %v1022
        %v1027 = vadd.f32 %v979, %v1025
        %v1028 = vadd.f32 %v980, %v1026
        %1029 = vrot.lane.b32.xlu0 %v692, 19
        %v1030 = vpop.permute.xlu0 %1029
        %1031 = vrot.lane.b32.xlu0 %v693, 19
        %v1032 = vpop.permute.xlu0 %1031
        %vm1033 = vcmp.lt.s32.totalorder %v436, 19
        %v1034 = vsel %vm1033, %v1030, %v1032
        %v1035 = vsel %vm1033, %v1032, %v1030
        %s1036 = scalar_lea.vmem [#allocation7], 56
        %v1037 = vld [vmem:[%s1036] sm:$0xf]
        %v1040 = vunpack.c.l.s4 1983009808
        %v1041 = vunpack.c.0.s8 %v1040
        %v1042 = vlaneseq
        %v1043 = vshrl.u32 %v1042, 7
        %v1044 = vsub.s32 %v1041, %v1043
        %v1045 = vrot.slane %v1037, %v1044
        %v1046 = vcombine.high %v1045, %v1045
        %v1049 = vmul.f32 %v1035, %v1045
        %v1050 = vmul.f32 %v1034, %v1046
        %v1051 = vadd.f32 %v1003, %v1049
        %v1052 = vadd.f32 %v1004, %v1050
        %1053 = vrot.lane.b32.xlu0 %v692, 18
        %v1054 = vpop.permute.xlu0 %1053
        %1055 = vrot.lane.b32.xlu0 %v693, 18
        %v1056 = vpop.permute.xlu0 %1055
        %vm1057 = vcmp.lt.s32.totalorder %v436, 18
        %v1058 = vsel %vm1057, %v1054, %v1056
        %v1059 = vsel %vm1057, %v1056, %v1054
        %s1060 = scalar_lea.vmem [#allocation7], 60
        %v1061 = vld [vmem:[%s1060] sm:$0xf]
        %v1064 = vunpack.c.l.s4 1983009808
        %v1065 = vunpack.c.0.s8 %v1064
        %v1066 = vlaneseq
        %v1067 = vshrl.u32 %v1066, 7
        %v1068 = vsub.s32 %v1065, %v1067
        %v1069 = vrot.slane %v1061, %v1068
        %v1070 = vcombine.high %v1069, %v1069
        %v1073 = vmul.f32 %v1059, %v1069
        %v1074 = vmul.f32 %v1058, %v1070
        %v1075 = vadd.f32 %v1027, %v1073
        %v1076 = vadd.f32 %v1028, %v1074
        %1077 = vrot.lane.b32.xlu0 %v692, 17
        %v1078 = vpop.permute.xlu0 %1077
        %1079 = vrot.lane.b32.xlu0 %v693, 17
        %v1080 = vpop.permute.xlu0 %1079
        %vm1081 = vcmp.lt.s32.totalorder %v436, 17
        %v1082 = vsel %vm1081, %v1078, %v1080
        %v1083 = vsel %vm1081, %v1080, %v1078
        %s1084 = scalar_lea.vmem [#allocation7], 64
        %v1085 = vld [vmem:[%s1084] sm:$0xf]
        %v1088 = vunpack.c.l.s4 1983009808
        %v1089 = vunpack.c.0.s8 %v1088
        %v1090 = vlaneseq
        %v1091 = vshrl.u32 %v1090, 7
        %v1092 = vsub.s32 %v1089, %v1091
        %v1093 = vrot.slane %v1085, %v1092
        %v1094 = vcombine.high %v1093, %v1093
        %v1097 = vmul.f32 %v1083, %v1093
        %v1098 = vmul.f32 %v1082, %v1094
        %v1099 = vadd.f32 %v1051, %v1097
        %v1100 = vadd.f32 %v1052, %v1098
        %1101 = vrot.lane.b32.xlu0 %v692, 16
        %v1102 = vpop.permute.xlu0 %1101
        %1103 = vrot.lane.b32.xlu0 %v693, 16
        %v1104 = vpop.permute.xlu0 %1103
        %vm1105 = vcmp.lt.s32.totalorder %v436, 16
        %v1106 = vsel %vm1105, %v1102, %v1104
        %v1107 = vsel %vm1105, %v1104, %v1102
        %s1108 = scalar_lea.vmem [#allocation7], 68
        %v1109 = vld [vmem:[%s1108] sm:$0xf]
        %v1112 = vunpack.c.l.s4 1983009808
        %v1113 = vunpack.c.0.s8 %v1112
        %v1114 = vlaneseq
        %v1115 = vshrl.u32 %v1114, 7
        %v1116 = vsub.s32 %v1113, %v1115
        %v1117 = vrot.slane %v1109, %v1116
        %v1118 = vcombine.high %v1117, %v1117
        %v1121 = vmul.f32 %v1107, %v1117
        %v1122 = vmul.f32 %v1106, %v1118
        %v1123 = vadd.f32 %v1075, %v1121
        %v1124 = vadd.f32 %v1076, %v1122
        %1125 = vrot.lane.b32.xlu0 %v692, 15
        %v1126 = vpop.permute.xlu0 %1125
        %1127 = vrot.lane.b32.xlu0 %v693, 15
        %v1128 = vpop.permute.xlu0 %1127
        %vm1129 = vcmp.lt.s32.totalorder %v436, 15
        %v1130 = vsel %vm1129, %v1126, %v1128
        %v1131 = vsel %vm1129, %v1128, %v1126
        %s1132 = scalar_lea.vmem [#allocation7], 72
        %v1133 = vld [vmem:[%s1132] sm:$0xf]
        %v1136 = vunpack.c.l.s4 1983009808
        %v1137 = vunpack.c.0.s8 %v1136
        %v1138 = vlaneseq
        %v1139 = vshrl.u32 %v1138, 7
        %v1140 = vsub.s32 %v1137, %v1139
        %v1141 = vrot.slane %v1133, %v1140
        %v1142 = vcombine.high %v1141, %v1141
        %v1145 = vmul.f32 %v1131, %v1141
        %v1146 = vmul.f32 %v1130, %v1142
        %v1147 = vadd.f32 %v1099, %v1145
        %v1148 = vadd.f32 %v1100, %v1146
        %1149 = vrot.lane.b32.xlu0 %v692, 14
        %v1150 = vpop.permute.xlu0 %1149
        %1151 = vrot.lane.b32.xlu0 %v693, 14
        %v1152 = vpop.permute.xlu0 %1151
        %vm1153 = vcmp.lt.s32.totalorder %v436, 14
        %v1154 = vsel %vm1153, %v1150, %v1152
        %v1155 = vsel %vm1153, %v1152, %v1150
        %s1156 = scalar_lea.vmem [#allocation7], 76
        %v1157 = vld [vmem:[%s1156] sm:$0xf]
        %v1160 = vunpack.c.l.s4 1983009808
        %v1161 = vunpack.c.0.s8 %v1160
        %v1162 = vlaneseq
        %v1163 = vshrl.u32 %v1162, 7
        %v1164 = vsub.s32 %v1161, %v1163
        %v1165 = vrot.slane %v1157, %v1164
        %v1166 = vcombine.high %v1165, %v1165
        %v1169 = vmul.f32 %v1155, %v1165
        %v1170 = vmul.f32 %v1154, %v1166
        %v1171 = vadd.f32 %v1123, %v1169
        %v1172 = vadd.f32 %v1124, %v1170
        %1173 = vrot.lane.b32.xlu0 %v692, 13
        %v1174 = vpop.permute.xlu0 %1173
        %1175 = vrot.lane.b32.xlu0 %v693, 13
        %v1176 = vpop.permute.xlu0 %1175
        %vm1177 = vcmp.lt.s32.totalorder %v436, 13
        %v1178 = vsel %vm1177, %v1174, %v1176
        %v1179 = vsel %vm1177, %v1176, %v1174
        %s1180 = scalar_lea.vmem [#allocation7], 80
        %v1181 = vld [vmem:[%s1180] sm:$0xf]
        %v1184 = vunpack.c.l.s4 1983009808
        %v1185 = vunpack.c.0.s8 %v1184
        %v1186 = vlaneseq
        %v1187 = vshrl.u32 %v1186, 7
        %v1188 = vsub.s32 %v1185, %v1187
        %v1189 = vrot.slane %v1181, %v1188
        %v1190 = vcombine.high %v1189, %v1189
        %v1193 = vmul.f32 %v1179, %v1189
        %v1194 = vmul.f32 %v1178, %v1190
        %v1195 = vadd.f32 %v1147, %v1193
        %v1196 = vadd.f32 %v1148, %v1194
        %1197 = vrot.lane.b32.xlu0 %v692, 3
        %v1198 = vpop.permute.xlu0 %1197
        %1199 = vrot.lane.b32.xlu0 %v693, 3
        %v1200 = vpop.permute.xlu0 %1199
        %vm1201 = vcmp.lt.s32.totalorder %v436, 3
        %v1202 = vsel %vm1201, %v1198, %v1200
        %v1203 = vsel %vm1201, %v1200, %v1198
        %s1204 = scalar_lea.vmem [#allocation7], 84
        %v1205 = vld [vmem:[%s1204] sm:$0xf]
        %v1208 = vunpack.c.l.s4 1983009808
        %v1209 = vunpack.c.0.s8 %v1208
        %v1210 = vlaneseq
        %v1211 = vshrl.u32 %v1210, 7
        %v1212 = vsub.s32 %v1209, %v1211
        %v1213 = vrot.slane %v1205, %v1212
        %v1214 = vcombine.high %v1213, %v1213
        %v1217 = vmul.f32 %v1203, %v1213
        %v1218 = vmul.f32 %v1202, %v1214
        %v1219 = vadd.f32 %v1171, %v1217
        %v1220 = vadd.f32 %v1172, %v1218
        %1221 = vrot.lane.b32.xlu0 %v692, 2
        %v1222 = vpop.permute.xlu0 %1221
        %1223 = vrot.lane.b32.xlu0 %v693, 2
        %v1224 = vpop.permute.xlu0 %1223
        %vm1225 = vcmp.lt.s32.totalorder %v436, 2
        %v1226 = vsel %vm1225, %v1222, %v1224
        %v1227 = vsel %vm1225, %v1224, %v1222
        %s1228 = scalar_lea.vmem [#allocation7], 88
        %v1229 = vld [vmem:[%s1228] sm:$0xf]
        %v1232 = vunpack.c.l.s4 1983009808
        %v1233 = vunpack.c.0.s8 %v1232
        %v1234 = vlaneseq
        %v1235 = vshrl.u32 %v1234, 7
        %v1236 = vsub.s32 %v1233, %v1235
        %v1237 = vrot.slane %v1229, %v1236
        %v1238 = vcombine.high %v1237, %v1237
        %v1241 = vmul.f32 %v1227, %v1237
        %v1242 = vmul.f32 %v1226, %v1238
        %v1243 = vadd.f32 %v1195, %v1241
        %v1244 = vadd.f32 %v1196, %v1242
        %1245 = vrot.lane.b32.xlu0 %v692, 1
        %v1246 = vpop.permute.xlu0 %1245
        %1247 = vrot.lane.b32.xlu0 %v693, 1
        %v1248 = vpop.permute.xlu0 %1247
        %vm1249 = vcmp.lt.s32.totalorder %v436, 1
        %v1250 = vsel %vm1249, %v1246, %v1248
        %v1251 = vsel %vm1249, %v1248, %v1246
        %s1252 = scalar_lea.vmem [#allocation7], 92
        %v1253 = vld [vmem:[%s1252] sm:$0xf]
        %v1256 = vunpack.c.l.s4 1983009808
        %v1257 = vunpack.c.0.s8 %v1256
        %v1258 = vlaneseq
        %v1259 = vshrl.u32 %v1258, 7
        %v1260 = vsub.s32 %v1257, %v1259
        %v1261 = vrot.slane %v1253, %v1260
        %v1262 = vcombine.high %v1261, %v1261
        %v1265 = vmul.f32 %v1251, %v1261
        %v1266 = vmul.f32 %v1250, %v1262
        %v1267 = vadd.f32 %v1219, %v1265
        %v1268 = vadd.f32 %v1220, %v1266
        %s1269 = scalar_lea.vmem [#allocation7], 96
        %v1270 = vld [vmem:[%s1269] sm:$0xf]
        %v1273 = vunpack.c.l.s4 1983009808
        %v1274 = vunpack.c.0.s8 %v1273
        %v1275 = vlaneseq
        %v1276 = vshrl.u32 %v1275, 7
        %v1277 = vsub.s32 %v1274, %v1276
        %v1278 = vrot.slane %v1270, %v1277
        %v1279 = vcombine.high %v1278, %v1278
        %v1282 = vmul.f32 %v692, %v1278
        %v1283 = vmul.f32 %v693, %v1279
        %v1284 = vadd.f32 %v1243, %v1282
        %v1285 = vadd.f32 %v1244, %v1283
        %1286 = vrot.lane.b32.xlu0 %v692, 127
        %v1287 = vpop.permute.xlu0 %1286
        %1288 = vrot.lane.b32.xlu0 %v693, 127
        %v1289 = vpop.permute.xlu0 %1288
        %vm1290 = vcmp.lt.s32.totalorder %v436, 127
        %v1291 = vsel %vm1290, %v1287, %v1289
        %v1292 = vsel %vm1290, %v1289, %v1287
        %s1293 = scalar_lea.vmem [#allocation7], 100
        %v1294 = vld [vmem:[%s1293] sm:$0xf]
        %v1297 = vunpack.c.l.s4 1983009808
        %v1298 = vunpack.c.0.s8 %v1297
        %v1299 = vlaneseq
        %v1300 = vshrl.u32 %v1299, 7
        %v1301 = vsub.s32 %v1298, %v1300
        %v1302 = vrot.slane %v1294, %v1301
        %v1303 = vcombine.high %v1302, %v1302
        %v1306 = vmul.f32 %v1291, %v1302
        %v1307 = vmul.f32 %v1292, %v1303
        %v1308 = vadd.f32 %v1267, %v1306
        %v1309 = vadd.f32 %v1268, %v1307
        %1310 = vrot.lane.b32.xlu0 %v692, 126
        %v1311 = vpop.permute.xlu0 %1310
        %1312 = vrot.lane.b32.xlu0 %v693, 126
        %v1313 = vpop.permute.xlu0 %1312
        %vm1314 = vcmp.lt.s32.totalorder %v436, 126
        %v1315 = vsel %vm1314, %v1311, %v1313
        %v1316 = vsel %vm1314, %v1313, %v1311
        %s1317 = scalar_lea.vmem [#allocation7], 104
        %v1318 = vld [vmem:[%s1317] sm:$0xf]
        %v1321 = vunpack.c.l.s4 1983009808
        %v1322 = vunpack.c.0.s8 %v1321
        %v1323 = vlaneseq
        %v1324 = vshrl.u32 %v1323, 7
        %v1325 = vsub.s32 %v1322, %v1324
        %v1326 = vrot.slane %v1318, %v1325
        %v1327 = vcombine.high %v1326, %v1326
        %v1330 = vmul.f32 %v1315, %v1326
        %v1331 = vmul.f32 %v1316, %v1327
        %v1332 = vadd.f32 %v1284, %v1330
        %v1333 = vadd.f32 %v1285, %v1331
        %1334 = vrot.lane.b32.xlu0 %v692, 125
        %v1335 = vpop.permute.xlu0 %1334
        %1336 = vrot.lane.b32.xlu0 %v693, 125
        %v1337 = vpop.permute.xlu0 %1336
        %vm1338 = vcmp.lt.s32.totalorder %v436, 125
        %v1339 = vsel %vm1338, %v1335, %v1337
        %v1340 = vsel %vm1338, %v1337, %v1335
        %s1341 = scalar_lea.vmem [#allocation7], 108
        %v1342 = vld [vmem:[%s1341] sm:$0xf]
        %v1345 = vunpack.c.l.s4 1983009808
        %v1346 = vunpack.c.0.s8 %v1345
        %v1347 = vlaneseq
        %v1348 = vshrl.u32 %v1347, 7
        %v1349 = vsub.s32 %v1346, %v1348
        %v1350 = vrot.slane %v1342, %v1349
        %v1351 = vcombine.high %v1350, %v1350
        %v1354 = vmul.f32 %v1339, %v1350
        %v1355 = vmul.f32 %v1340, %v1351
        %v1356 = vadd.f32 %v1308, %v1354
        %v1357 = vadd.f32 %v1309, %v1355
        %1358 = vrot.lane.b32.xlu0 %v692, 115
        %v1359 = vpop.permute.xlu0 %1358
        %1360 = vrot.lane.b32.xlu0 %v693, 115
        %v1361 = vpop.permute.xlu0 %1360
        %vm1362 = vcmp.lt.s32.totalorder %v436, 115
        %v1363 = vsel %vm1362, %v1359, %v1361
        %v1364 = vsel %vm1362, %v1361, %v1359
        %s1365 = scalar_lea.vmem [#allocation7], 112
        %v1366 = vld [vmem:[%s1365] sm:$0xf]
        %v1369 = vunpack.c.l.s4 1983009808
        %v1370 = vunpack.c.0.s8 %v1369
        %v1371 = vlaneseq
        %v1372 = vshrl.u32 %v1371, 7
        %v1373 = vsub.s32 %v1370, %v1372
        %v1374 = vrot.slane %v1366, %v1373
        %v1375 = vcombine.high %v1374, %v1374
        %v1378 = vmul.f32 %v1363, %v1374
        %v1379 = vmul.f32 %v1364, %v1375
        %v1380 = vadd.f32 %v1332, %v1378
        %v1381 = vadd.f32 %v1333, %v1379
        %1382 = vrot.lane.b32.xlu0 %v692, 114
        %v1383 = vpop.permute.xlu0 %1382
        %1384 = vrot.lane.b32.xlu0 %v693, 114
        %v1385 = vpop.permute.xlu0 %1384
        %vm1386 = vcmp.lt.s32.totalorder %v436, 114
        %v1387 = vsel %vm1386, %v1383, %v1385
        %v1388 = vsel %vm1386, %v1385, %v1383
        %s1389 = scalar_lea.vmem [#allocation7], 116
        %v1390 = vld [vmem:[%s1389] sm:$0xf]
        %v1393 = vunpack.c.l.s4 1983009808
        %v1394 = vunpack.c.0.s8 %v1393
        %v1395 = vlaneseq
        %v1396 = vshrl.u32 %v1395, 7
        %v1397 = vsub.s32 %v1394, %v1396
        %v1398 = vrot.slane %v1390, %v1397
        %v1399 = vcombine.high %v1398, %v1398
        %v1402 = vmul.f32 %v1387, %v1398
        %v1403 = vmul.f32 %v1388, %v1399
        %v1404 = vadd.f32 %v1356, %v1402
        %v1405 = vadd.f32 %v1357, %v1403
        %1406 = vrot.lane.b32.xlu0 %v692, 113
        %v1407 = vpop.permute.xlu0 %1406
        %1408 = vrot.lane.b32.xlu0 %v693, 113
        %v1409 = vpop.permute.xlu0 %1408
        %vm1410 = vcmp.lt.s32.totalorder %v436, 113
        %v1411 = vsel %vm1410, %v1407, %v1409
        %v1412 = vsel %vm1410, %v1409, %v1407
        %s1413 = scalar_lea.vmem [#allocation7], 120
        %v1414 = vld [vmem:[%s1413] sm:$0xf]
        %v1417 = vunpack.c.l.s4 1983009808
        %v1418 = vunpack.c.0.s8 %v1417
        %v1419 = vlaneseq
        %v1420 = vshrl.u32 %v1419, 7
        %v1421 = vsub.s32 %v1418, %v1420
        %v1422 = vrot.slane %v1414, %v1421
        %v1423 = vcombine.high %v1422, %v1422
        %v1426 = vmul.f32 %v1411, %v1422
        %v1427 = vmul.f32 %v1412, %v1423
        %v1428 = vadd.f32 %v1380, %v1426
        %v1429 = vadd.f32 %v1381, %v1427
        %1430 = vrot.lane.b32.xlu0 %v692, 112
        %v1431 = vpop.permute.xlu0 %1430
        %1432 = vrot.lane.b32.xlu0 %v693, 112
        %v1433 = vpop.permute.xlu0 %1432
        %vm1434 = vcmp.lt.s32.totalorder %v436, 112
        %v1435 = vsel %vm1434, %v1431, %v1433
        %v1436 = vsel %vm1434, %v1433, %v1431
        %s1437 = scalar_lea.vmem [#allocation7], 124
        %v1438 = vld [vmem:[%s1437] sm:$0xf]
        %v1441 = vunpack.c.l.s4 1983009808
        %v1442 = vunpack.c.0.s8 %v1441
        %v1443 = vlaneseq
        %v1444 = vshrl.u32 %v1443, 7
        %v1445 = vsub.s32 %v1442, %v1444
        %v1446 = vrot.slane %v1438, %v1445
        %v1447 = vcombine.high %v1446, %v1446
        %v1450 = vmul.f32 %v1435, %v1446
        %v1451 = vmul.f32 %v1436, %v1447
        %v1452 = vadd.f32 %v1404, %v1450
        %v1453 = vadd.f32 %v1405, %v1451
        %1454 = vrot.lane.b32.xlu0 %v692, 111
        %v1455 = vpop.permute.xlu0 %1454
        %1456 = vrot.lane.b32.xlu0 %v693, 111
        %v1457 = vpop.permute.xlu0 %1456
        %vm1458 = vcmp.lt.s32.totalorder %v436, 111
        %v1459 = vsel %vm1458, %v1455, %v1457
        %v1460 = vsel %vm1458, %v1457, %v1455
        %s1461 = scalar_lea.vmem [#allocation7], 128
        %v1462 = vld [vmem:[%s1461] sm:$0xf]
        %v1465 = vunpack.c.l.s4 1983009808
        %v1466 = vunpack.c.0.s8 %v1465
        %v1467 = vlaneseq
        %v1468 = vshrl.u32 %v1467, 7
        %v1469 = vsub.s32 %v1466, %v1468
        %v1470 = vrot.slane %v1462, %v1469
        %v1471 = vcombine.high %v1470, %v1470
        %v1474 = vmul.f32 %v1459, %v1470
        %v1475 = vmul.f32 %v1460, %v1471
        %v1476 = vadd.f32 %v1428, %v1474
        %v1477 = vadd.f32 %v1429, %v1475
        %1478 = vrot.lane.b32.xlu0 %v692, 110
        %v1479 = vpop.permute.xlu0 %1478
        %1480 = vrot.lane.b32.xlu0 %v693, 110
        %v1481 = vpop.permute.xlu0 %1480
        %vm1482 = vcmp.lt.s32.totalorder %v436, 110
        %v1483 = vsel %vm1482, %v1479, %v1481
        %v1484 = vsel %vm1482, %v1481, %v1479
        %s1485 = scalar_lea.vmem [#allocation7], 132
        %v1486 = vld [vmem:[%s1485] sm:$0xf]
        %v1489 = vunpack.c.l.s4 1983009808
        %v1490 = vunpack.c.0.s8 %v1489
        %v1491 = vlaneseq
        %v1492 = vshrl.u32 %v1491, 7
        %v1493 = vsub.s32 %v1490, %v1492
        %v1494 = vrot.slane %v1486, %v1493
        %v1495 = vcombine.high %v1494, %v1494
        %v1498 = vmul.f32 %v1483, %v1494
        %v1499 = vmul.f32 %v1484, %v1495
        %v1500 = vadd.f32 %v1452, %v1498
        %v1501 = vadd.f32 %v1453, %v1499
        %1502 = vrot.lane.b32.xlu0 %v692, 109
        %v1503 = vpop.permute.xlu0 %1502
        %1504 = vrot.lane.b32.xlu0 %v693, 109
        %v1505 = vpop.permute.xlu0 %1504
        %vm1506 = vcmp.lt.s32.totalorder %v436, 109
        %v1507 = vsel %vm1506, %v1503, %v1505
        %v1508 = vsel %vm1506, %v1505, %v1503
        %s1509 = scalar_lea.vmem [#allocation7], 136
        %v1510 = vld [vmem:[%s1509] sm:$0xf]
        %v1513 = vunpack.c.l.s4 1983009808
        %v1514 = vunpack.c.0.s8 %v1513
        %v1515 = vlaneseq
        %v1516 = vshrl.u32 %v1515, 7
        %v1517 = vsub.s32 %v1514, %v1516
        %v1518 = vrot.slane %v1510, %v1517
        %v1519 = vcombine.high %v1518, %v1518
        %v1522 = vmul.f32 %v1507, %v1518
        %v1523 = vmul.f32 %v1508, %v1519
        %v1524 = vadd.f32 %v1476, %v1522
        %v1525 = vadd.f32 %v1477, %v1523
        %1526 = vrot.lane.b32.xlu0 %v692, 99
        %v1527 = vpop.permute.xlu0 %1526
        %1528 = vrot.lane.b32.xlu0 %v693, 99
        %v1529 = vpop.permute.xlu0 %1528
        %vm1530 = vcmp.lt.s32.totalorder %v436, 99
        %v1531 = vsel %vm1530, %v1527, %v1529
        %v1532 = vsel %vm1530, %v1529, %v1527
        %s1533 = scalar_lea.vmem [#allocation7], 140
        %v1534 = vld [vmem:[%s1533] sm:$0xf]
        %v1537 = vunpack.c.l.s4 1983009808
        %v1538 = vunpack.c.0.s8 %v1537
        %v1539 = vlaneseq
        %v1540 = vshrl.u32 %v1539, 7
        %v1541 = vsub.s32 %v1538, %v1540
        %v1542 = vrot.slane %v1534, %v1541
        %v1543 = vcombine.high %v1542, %v1542
        %v1546 = vmul.f32 %v1531, %v1542
        %v1547 = vmul.f32 %v1532, %v1543
        %v1548 = vadd.f32 %v1500, %v1546
        %v1549 = vadd.f32 %v1501, %v1547
        %1550 = vrot.lane.b32.xlu0 %v692, 98
        %v1551 = vpop.permute.xlu0 %1550
        %1552 = vrot.lane.b32.xlu0 %v693, 98
        %v1553 = vpop.permute.xlu0 %1552
        %vm1554 = vcmp.lt.s32.totalorder %v436, 98
        %v1555 = vsel %vm1554, %v1551, %v1553
        %v1556 = vsel %vm1554, %v1553, %v1551
        %s1557 = scalar_lea.vmem [#allocation7], 144
        %v1558 = vld [vmem:[%s1557] sm:$0xf]
        %v1561 = vunpack.c.l.s4 1983009808
        %v1562 = vunpack.c.0.s8 %v1561
        %v1563 = vlaneseq
        %v1564 = vshrl.u32 %v1563, 7
        %v1565 = vsub.s32 %v1562, %v1564
        %v1566 = vrot.slane %v1558, %v1565
        %v1567 = vcombine.high %v1566, %v1566
        %v1570 = vmul.f32 %v1555, %v1566
        %v1571 = vmul.f32 %v1556, %v1567
        %v1572 = vadd.f32 %v1524, %v1570
        %v1573 = vadd.f32 %v1525, %v1571
        %1574 = vrot.lane.b32.xlu0 %v692, 97
        %v1575 = vpop.permute.xlu0 %1574
        %1576 = vrot.lane.b32.xlu0 %v693, 97
        %v1577 = vpop.permute.xlu0 %1576
        %vm1578 = vcmp.lt.s32.totalorder %v436, 97
        %v1579 = vsel %vm1578, %v1575, %v1577
        %v1580 = vsel %vm1578, %v1577, %v1575
        %s1581 = scalar_lea.vmem [#allocation7], 148
        %v1582 = vld [vmem:[%s1581] sm:$0xf]
        %v1585 = vunpack.c.l.s4 1983009808
        %v1586 = vunpack.c.0.s8 %v1585
        %v1587 = vlaneseq
        %v1588 = vshrl.u32 %v1587, 7
        %v1589 = vsub.s32 %v1586, %v1588
        %v1590 = vrot.slane %v1582, %v1589
        %v1591 = vcombine.high %v1590, %v1590
        %v1594 = vmul.f32 %v1579, %v1590
        %v1595 = vmul.f32 %v1580, %v1591
        %v1596 = vadd.f32 %v1548, %v1594
        %v1597 = vadd.f32 %v1549, %v1595
        %1598 = vrot.lane.b32.xlu0 %v692, 96
        %v1599 = vpop.permute.xlu0 %1598
        %1600 = vrot.lane.b32.xlu0 %v693, 96
        %v1601 = vpop.permute.xlu0 %1600
        %vm1602 = vcmp.lt.s32.totalorder %v436, 96
        %v1603 = vsel %vm1602, %v1599, %v1601
        %v1604 = vsel %vm1602, %v1601, %v1599
        %s1605 = scalar_lea.vmem [#allocation7], 152
        %v1606 = vld [vmem:[%s1605] sm:$0xf]
        %v1609 = vunpack.c.l.s4 1983009808
        %v1610 = vunpack.c.0.s8 %v1609
        %v1611 = vlaneseq
        %v1612 = vshrl.u32 %v1611, 7
        %v1613 = vsub.s32 %v1610, %v1612
        %v1614 = vrot.slane %v1606, %v1613
        %v1615 = vcombine.high %v1614, %v1614
        %v1618 = vmul.f32 %v1603, %v1614
        %v1619 = vmul.f32 %v1604, %v1615
        %v1620 = vadd.f32 %v1572, %v1618
        %v1621 = vadd.f32 %v1573, %v1619
        %1622 = vrot.lane.b32.xlu0 %v692, 95
        %v1623 = vpop.permute.xlu0 %1622
        %1624 = vrot.lane.b32.xlu0 %v693, 95
        %v1625 = vpop.permute.xlu0 %1624
        %vm1626 = vcmp.lt.s32.totalorder %v436, 95
        %v1627 = vsel %vm1626, %v1623, %v1625
        %v1628 = vsel %vm1626, %v1625, %v1623
        %s1629 = scalar_lea.vmem [#allocation7], 156
        %v1630 = vld [vmem:[%s1629] sm:$0xf]
        %v1633 = vunpack.c.l.s4 1983009808
        %v1634 = vunpack.c.0.s8 %v1633
        %v1635 = vlaneseq
        %v1636 = vshrl.u32 %v1635, 7
        %v1637 = vsub.s32 %v1634, %v1636
        %v1638 = vrot.slane %v1630, %v1637
        %v1639 = vcombine.high %v1638, %v1638
        %v1642 = vmul.f32 %v1627, %v1638
        %v1643 = vmul.f32 %v1628, %v1639
        %v1644 = vadd.f32 %v1596, %v1642
        %v1645 = vadd.f32 %v1597, %v1643
        %1646 = vrot.lane.b32.xlu0 %v692, 94
        %v1647 = vpop.permute.xlu0 %1646
        %1648 = vrot.lane.b32.xlu0 %v693, 94
        %v1649 = vpop.permute.xlu0 %1648
        %vm1650 = vcmp.lt.s32.totalorder %v436, 94
        %v1651 = vsel %vm1650, %v1647, %v1649
        %v1652 = vsel %vm1650, %v1649, %v1647
        %s1653 = scalar_lea.vmem [#allocation7], 160
        %v1654 = vld [vmem:[%s1653] sm:$0xf]
        %v1657 = vunpack.c.l.s4 1983009808
        %v1658 = vunpack.c.0.s8 %v1657
        %v1659 = vlaneseq
        %v1660 = vshrl.u32 %v1659, 7
        %v1661 = vsub.s32 %v1658, %v1660
        %v1662 = vrot.slane %v1654, %v1661
        %v1663 = vcombine.high %v1662, %v1662
        %v1666 = vmul.f32 %v1651, %v1662
        %v1667 = vmul.f32 %v1652, %v1663
        %v1668 = vadd.f32 %v1620, %v1666
        %v1669 = vadd.f32 %v1621, %v1667
        %1670 = vrot.lane.b32.xlu0 %v692, 93
        %v1671 = vpop.permute.xlu0 %1670
        %1672 = vrot.lane.b32.xlu0 %v693, 93
        %v1673 = vpop.permute.xlu0 %1672
        %vm1674 = vcmp.lt.s32.totalorder %v436, 93
        %v1675 = vsel %vm1674, %v1671, %v1673
        %v1676 = vsel %vm1674, %v1673, %v1671
        %s1677 = scalar_lea.vmem [#allocation7], 164
        %v1678 = vld [vmem:[%s1677] sm:$0xf]
        %v1681 = vunpack.c.l.s4 1983009808
        %v1682 = vunpack.c.0.s8 %v1681
        %v1683 = vlaneseq
        %v1684 = vshrl.u32 %v1683, 7
        %v1685 = vsub.s32 %v1682, %v1684
        %v1686 = vrot.slane %v1678, %v1685
        %v1687 = vcombine.high %v1686, %v1686
        %v1690 = vmul.f32 %v1675, %v1686
        %v1691 = vmul.f32 %v1676, %v1687
        %v1692 = vadd.f32 %v1644, %v1690
        %v1693 = vadd.f32 %v1645, %v1691
        %1694 = vrot.lane.b32.xlu0 %v692, 83
        %v1695 = vpop.permute.xlu0 %1694
        %1696 = vrot.lane.b32.xlu0 %v693, 83
        %v1697 = vpop.permute.xlu0 %1696
        %vm1698 = vcmp.lt.s32.totalorder %v436, 83
        %v1699 = vsel %vm1698, %v1695, %v1697
        %v1700 = vsel %vm1698, %v1697, %v1695
        %s1701 = scalar_lea.vmem [#allocation7], 168
        %v1702 = vld [vmem:[%s1701] sm:$0xf]
        %v1705 = vunpack.c.l.s4 1983009808
        %v1706 = vunpack.c.0.s8 %v1705
        %v1707 = vlaneseq
        %v1708 = vshrl.u32 %v1707, 7
        %v1709 = vsub.s32 %v1706, %v1708
        %v1710 = vrot.slane %v1702, %v1709
        %v1711 = vcombine.high %v1710, %v1710
        %v1714 = vmul.f32 %v1699, %v1710
        %v1715 = vmul.f32 %v1700, %v1711
        %v1716 = vadd.f32 %v1668, %v1714
        %v1717 = vadd.f32 %v1669, %v1715
        %1718 = vrot.lane.b32.xlu0 %v692, 82
        %v1719 = vpop.permute.xlu0 %1718
        %1720 = vrot.lane.b32.xlu0 %v693, 82
        %v1721 = vpop.permute.xlu0 %1720
        %vm1722 = vcmp.lt.s32.totalorder %v436, 82
        %v1723 = vsel %vm1722, %v1719, %v1721
        %v1724 = vsel %vm1722, %v1721, %v1719
        %s1725 = scalar_lea.vmem [#allocation7], 172
        %v1726 = vld [vmem:[%s1725] sm:$0xf]
        %v1729 = vunpack.c.l.s4 1983009808
        %v1730 = vunpack.c.0.s8 %v1729
        %v1731 = vlaneseq
        %v1732 = vshrl.u32 %v1731, 7
        %v1733 = vsub.s32 %v1730, %v1732
        %v1734 = vrot.slane %v1726, %v1733
        %v1735 = vcombine.high %v1734, %v1734
        %v1738 = vmul.f32 %v1723, %v1734
        %v1739 = vmul.f32 %v1724, %v1735
        %v1740 = vadd.f32 %v1692, %v1738
        %v1741 = vadd.f32 %v1693, %v1739
        %1742 = vrot.lane.b32.xlu0 %v692, 81
        %v1743 = vpop.permute.xlu0 %1742
        %1744 = vrot.lane.b32.xlu0 %v693, 81
        %v1745 = vpop.permute.xlu0 %1744
        %vm1746 = vcmp.lt.s32.totalorder %v436, 81
        %v1747 = vsel %vm1746, %v1743, %v1745
        %v1748 = vsel %vm1746, %v1745, %v1743
        %s1749 = scalar_lea.vmem [#allocation7], 176
        %v1750 = vld [vmem:[%s1749] sm:$0xf]
        %v1753 = vunpack.c.l.s4 1983009808
        %v1754 = vunpack.c.0.s8 %v1753
        %v1755 = vlaneseq
        %v1756 = vshrl.u32 %v1755, 7
        %v1757 = vsub.s32 %v1754, %v1756
        %v1758 = vrot.slane %v1750, %v1757
        %v1759 = vcombine.high %v1758, %v1758
        %v1762 = vmul.f32 %v1747, %v1758
        %v1763 = vmul.f32 %v1748, %v1759
        %v1764 = vadd.f32 %v1716, %v1762
        %v1765 = vadd.f32 %v1717, %v1763
        %1766 = vrot.lane.b32.xlu0 %v692, 80
        %v1767 = vpop.permute.xlu0 %1766
        %1768 = vrot.lane.b32.xlu0 %v693, 80
        %v1769 = vpop.permute.xlu0 %1768
        %vm1770 = vcmp.lt.s32.totalorder %v436, 80
        %v1771 = vsel %vm1770, %v1767, %v1769
        %v1772 = vsel %vm1770, %v1769, %v1767
        %s1773 = scalar_lea.vmem [#allocation7], 180
        %v1774 = vld [vmem:[%s1773] sm:$0xf]
        %v1777 = vunpack.c.l.s4 1983009808
        %v1778 = vunpack.c.0.s8 %v1777
        %v1779 = vlaneseq
        %v1780 = vshrl.u32 %v1779, 7
        %v1781 = vsub.s32 %v1778, %v1780
        %v1782 = vrot.slane %v1774, %v1781
        %v1783 = vcombine.high %v1782, %v1782
        %v1786 = vmul.f32 %v1771, %v1782
        %v1787 = vmul.f32 %v1772, %v1783
        %v1788 = vadd.f32 %v1740, %v1786
        %v1789 = vadd.f32 %v1741, %v1787
        %1790 = vrot.lane.b32.xlu0 %v692, 79
        %v1791 = vpop.permute.xlu0 %1790
        %1792 = vrot.lane.b32.xlu0 %v693, 79
        %v1793 = vpop.permute.xlu0 %1792
        %vm1794 = vcmp.lt.s32.totalorder %v436, 79
        %v1795 = vsel %vm1794, %v1791, %v1793
        %v1796 = vsel %vm1794, %v1793, %v1791
        %s1797 = scalar_lea.vmem [#allocation7], 184
        %v1798 = vld [vmem:[%s1797] sm:$0xf]
        %v1801 = vunpack.c.l.s4 1983009808
        %v1802 = vunpack.c.0.s8 %v1801
        %v1803 = vlaneseq
        %v1804 = vshrl.u32 %v1803, 7
        %v1805 = vsub.s32 %v1802, %v1804
        %v1806 = vrot.slane %v1798, %v1805
        %v1807 = vcombine.high %v1806, %v1806
        %v1810 = vmul.f32 %v1795, %v1806
        %v1811 = vmul.f32 %v1796, %v1807
        %v1812 = vadd.f32 %v1764, %v1810
        %v1813 = vadd.f32 %v1765, %v1811
        %1814 = vrot.lane.b32.xlu0 %v692, 78
        %v1815 = vpop.permute.xlu0 %1814
        %1816 = vrot.lane.b32.xlu0 %v693, 78
        %v1817 = vpop.permute.xlu0 %1816
        %vm1818 = vcmp.lt.s32.totalorder %v436, 78
        %v1819 = vsel %vm1818, %v1815, %v1817
        %v1820 = vsel %vm1818, %v1817, %v1815
        %s1821 = scalar_lea.vmem [#allocation7], 188
        %v1822 = vld [vmem:[%s1821] sm:$0xf]
        %v1825 = vunpack.c.l.s4 1983009808
        %v1826 = vunpack.c.0.s8 %v1825
        %v1827 = vlaneseq
        %v1828 = vshrl.u32 %v1827, 7
        %v1829 = vsub.s32 %v1826, %v1828
        %v1830 = vrot.slane %v1822, %v1829
        %v1831 = vcombine.high %v1830, %v1830
        %v1834 = vmul.f32 %v1819, %v1830
        %v1835 = vmul.f32 %v1820, %v1831
        %v1836 = vadd.f32 %v1788, %v1834
        %v1837 = vadd.f32 %v1789, %v1835
        %1838 = vrot.lane.b32.xlu0 %v692, 77
        %v1839 = vpop.permute.xlu0 %1838
        %1840 = vrot.lane.b32.xlu0 %v693, 77
        %v1841 = vpop.permute.xlu0 %1840
        %vm1842 = vcmp.lt.s32.totalorder %v436, 77
        %v1843 = vsel %vm1842, %v1839, %v1841
        %v1844 = vsel %vm1842, %v1841, %v1839
        %s1845 = scalar_lea.vmem [#allocation7], 192
        %v1846 = vld [vmem:[%s1845] sm:$0xf]
        %v1849 = vunpack.c.l.s4 1983009808
        %v1850 = vunpack.c.0.s8 %v1849
        %v1851 = vlaneseq
        %v1852 = vshrl.u32 %v1851, 7
        %v1853 = vsub.s32 %v1850, %v1852
        %v1854 = vrot.slane %v1846, %v1853
        %v1855 = vcombine.high %v1854, %v1854
        %v1858 = vmul.f32 %v1843, %v1854
        %v1859 = vmul.f32 %v1844, %v1855
        %v1860 = vadd.f32 %v1812, %v1858
        %v1861 = vadd.f32 %v1813, %v1859
        %v1862 = vadd.f32 %v1860, %v1836
        %v1863 = vadd.f32 %v1861, %v1837
        %v1866 = vrot.slane %v1862, 1
        %v1867 = vrot.slane %v1863, 1
        %v1870 = vadd.f32 %v1862, %v1866
        %v1871 = vadd.f32 %v1863, %v1867
        %v1872 = vstv %s401
        %v1873 = vadd.f32 %v1870, %v1872
        %v1874 = vadd.f32 %v1871, %v1872
        %v1875 = vsub.f32 0.0, %v1873
        %v1876 = vsub.f32 0.0, %v1874
        %v1877 = vmul.f32 %v1875, 1.442695
        %v1878 = vpow.pop %v1877
        %v1879 = vmul.f32 %v1876, 1.442695
        %v1880 = vpow.pop %v1879
        %v1881 = vadd.f32 %v1878, 1.0
        %v1882 = vadd.f32 %v1880, 1.0
        %v1883 = vrcp.pop %v1881
        %v1884 = vrcp.pop %v1882
        %v1887 = vcombine.low %v1883, %v1884
        %v1889 = vunpack.c.l.s4 1966171168
        %v1890 = vunpack.c.0.s8 %v1889
        %v1891 = vlaneseq
        %v1892 = vshrl.u32 %v1891, 7
        %v1893 = vsub.s32 %v1890, %v1892
        %v1894 = vrot.slane %v1887, %v1893
        %v1896 = vunpack.c.l.s4 1966171168
        %v1897 = vunpack.c.0.s8 %v1896
        %v1898 = vlaneseq
        %v1899 = vshrl.u32 %v1898, 7
        %v1900 = vsub.s32 %v1897, %v1899
        %v1901 = vrot.slane %v1894, %v1900
        %v1903 = vlaneseq
        %vm1904 = vcmp.ge.s32.totalorder %v1903, 0
        %vm1905 = vcmp.lt.s32.totalorder %v1903, 256
        %vm1906 = vmand %vm1904, %vm1905
        %1907 = vst.msk [vmem:[%s397] sm:$0x3] %vm1906, %v1901
        %v1908 = vld [vmem:[%s345] sm:$0xff]
        %v1909 = vld [vmem:[%s345 + $0x8] sm:$0xff]
        %v1910 = vmul.f32 %v1908, %v554
        %v1911 = vmul.f32 %v1909, %v554
        %v1912 = vlaneseq
        %v1913 = vshrl.u32 %v1912, 7
        %v1914 = vsub.s32 0, %v1913
        %v1915 = vrot.slane %v1883, %v1914
        %v1916 = vlaneseq
        %v1917 = vshrl.u32 %v1916, 7
        %v1918 = vsub.s32 0, %v1917
        %v1919 = vrot.slane %v1884, %v1918
        %v1920 = vmul.f32 %v1910, %v1915
        %v1921 = vmul.f32 %v1911, %v1919
        %1922 = vst [vmem:[%s384] sm:$0xff] %v1920
        %1923 = vst [vmem:[%s384 + $0x8] sm:$0xff] %v1921
        %v1924 = vld [vmem:[%s345 + $0x10] sm:$0xff]
        %v1925 = vld [vmem:[%s345 + $0x18] sm:$0xff]
        %v1926 = vmul.f32 %v1924, %v586
        %v1927 = vmul.f32 %v1925, %v586
        %v1928 = vmul.f32 %v1926, %v1915
        %v1929 = vmul.f32 %v1927, %v1919
        %1930 = vst [vmem:[%s384 + $0x10] sm:$0xff] %v1928
        %1931 = vst [vmem:[%s384 + $0x18] sm:$0xff] %v1929
        %v1932 = vld [vmem:[%s345 + $0x20] sm:$0xff]
        %v1933 = vld [vmem:[%s345 + $0x28] sm:$0xff]
        %v1934 = vmul.f32 %v1932, %v622
        %v1935 = vmul.f32 %v1933, %v622
        %v1936 = vmul.f32 %v1934, %v1915
        %v1937 = vmul.f32 %v1935, %v1919
        %1938 = vst [vmem:[%s384 + $0x20] sm:$0xff] %v1936
        %1939 = vst [vmem:[%s384 + $0x28] sm:$0xff] %v1937
        %v1940 = vld [vmem:[%s345 + $0x30] sm:$0xff]
        %v1941 = vld [vmem:[%s345 + $0x38] sm:$0xff]
        %v1942 = vmul.f32 %v1940, %v658
        %v1943 = vmul.f32 %v1941, %v658
        %v1944 = vmul.f32 %v1942, %v1915
        %v1945 = vmul.f32 %v1943, %v1919
        %1946 = vst [vmem:[%s384 + $0x30] sm:$0xff] %v1944
        %1947 = vst [vmem:[%s384 + $0x38] sm:$0xff] %v1945
        %s1948 = sand.u32 %s193, 1
        %s1949 = scalar_lea.sflag [#allocation5], %s1948
        %s1950 = sand.u32 %s193, 1
        %s1951 = smul.addr %s1950, 64
        %s1952 = scalar_lea.vmem [#allocation10], %s1951
        %s1953 = sand.u32 %s33, 1
        %s1954 = scalar_lea.sflag [#allocation12], %s1953
        %s1955 = sand.u32 %s219, 1
        %s1956 = scalar_lea.vmem [#allocation11], %s1955
        %s1957 = sand.u32 %s33, 1
        %s1958 = scalar_lea.sflag [#allocation12], %s1957
        %s1959 = sand.u32 %s245, 1
        %s1960 = smul.addr %s1959, 2
        %s1961 = scalar_lea.vmem [#allocation13], %s1960
        // Predicated region
        $region61: #{tpu_custom_call.1} parent=47 // pred_check
          %p1962 = pneg %p203
        $region62: #{tpu_custom_call.1} parent=47 // pred_check_branch
          %1964 = sbr.rel (%p1962) target = $region64
        $region63: #{tpu_custom_call.1} parent=47 // pred_region
          %s1966 = ssub.s32 1024, 1024
          %1967 = vsyncadd %s1949, %s1966
          %s1968 = smul.addr %s33, 8
          %s1969 = smul.addr %s1968, 128
          %s1970 = scalar_lea.hbm %s7, %s1969
          %s1971 = sshll.u32 %s1952, 4
          %s1972 = int_to_ptr.vmem [resolvable:$true] %s1971
          %1977 = dma.vmem_to_hbm [thread:$0]  %s1972, 1024, %s1970, %s1949, 256, 256, 16
        $region64: #{tpu_custom_call.1} parent=47 // pred_fallthru
          _
        // Predicated region
        $region65: #{tpu_custom_call.1} parent=47 // pred_check
          %p1978 = pneg %p229
        $region66: #{tpu_custom_call.1} parent=47 // pred_check_branch
          %1980 = sbr.rel (%p1978) target = $region68
        $region67: #{tpu_custom_call.1} parent=47 // pred_region
          %s1982 = ssub.s32 16, 16
          %1983 = vsyncadd %s1954, %s1982
          %s1984 = smul.addr %s33, 16
          %s1985 = scalar_lea.hbm %s8, %s1984
          %s1987 = sshll.u32 %s1956, 4
          %s1988 = int_to_ptr.vmem [resolvable:$true] %s1987
          %1990 = dma.vmem_to_hbm [thread:$0]  %s1988, 16, %s1985, %s1954
        $region68: #{tpu_custom_call.1} parent=47 // pred_fallthru
          _
        // Predicated region
        $region69: #{tpu_custom_call.1} parent=47 // pred_check
          %p1991 = pneg %p255
        $region70: #{tpu_custom_call.1} parent=47 // pred_check_branch
          %1993 = sbr.rel (%p1991) target = $region72
        $region71: #{tpu_custom_call.1} parent=47 // pred_region
          %s1995 = ssub.s32 32, 32
          %1996 = vsyncadd %s1958, %s1995
          %s1997 = smul.addr %s33, 2
          %s1998 = smul.addr %s1997, 16
          %s1999 = scalar_lea.hbm %s9, %s1998
          %s2001 = sshll.u32 %s1961, 4
          %s2002 = int_to_ptr.vmem [resolvable:$true] %s2001
          %2004 = dma.vmem_to_hbm [thread:$0]  %s2002, 32, %s1999, %s1958
        $region72: #{tpu_custom_call.1} parent=47 // pred_fallthru
          _
      $region48: #{tpu_custom_call.1} parent=5 // pred_fallthru
        _
      %p2005 = scmp.le.s32.totalorder 2, %s28
      // Predicated region
      $region73: #{tpu_custom_call.1} parent=5 // pred_check
        %p2006 = pneg %p2005
      $region74: #{tpu_custom_call.1} parent=5 // pred_check_branch
        %2008 = sbr.rel (%p2006) target = $region76
      $region75: #{tpu_custom_call.1} parent=5 // pred_region
        %s2009 = ssub.s32 %s28, 2
        // Predicated region
        $region77: #{tpu_custom_call.1} parent=75 // pred_check
          %p2010 = pneg %p209
        $region78: #{tpu_custom_call.1} parent=75 // pred_check_branch
          %2012 = sbr.rel (%p2010) target = $region80
        $region79: #{tpu_custom_call.1} parent=75 // pred_region
          %s2013 = sand.u32 %s194, 1
          %s2014 = scalar_lea.sflag [#allocation5], %s2013
          %s2015 = sand.u32 %s194, 1
          %s2016 = smul.addr %s2015, 64
          %s2017 = scalar_lea.vmem [#allocation10], %s2016
          %2018 = dma.done %s2014, 1024
        $region80: #{tpu_custom_call.1} parent=75 // pred_fallthru
          _
        // Predicated region
        $region81: #{tpu_custom_call.1} parent=75 // pred_check
          %p2019 = pneg %p235
        $region82: #{tpu_custom_call.1} parent=75 // pred_check_branch
          %2021 = sbr.rel (%p2019) target = $region84
        $region83: #{tpu_custom_call.1} parent=75 // pred_region
          %s2022 = sand.u32 %s34, 1
          %s2023 = scalar_lea.sflag [#allocation12], %s2022
          %s2024 = sand.u32 %s220, 1
          %s2025 = scalar_lea.vmem [#allocation11], %s2024
          %2026 = dma.done %s2023, 16
        $region84: #{tpu_custom_call.1} parent=75 // pred_fallthru
          _
        // Predicated region
        $region85: #{tpu_custom_call.1} parent=75 // pred_check
          %p2027 = pneg %p261
        $region86: #{tpu_custom_call.1} parent=75 // pred_check_branch
          %2029 = sbr.rel (%p2027) target = $region88
        $region87: #{tpu_custom_call.1} parent=75 // pred_region
          %s2030 = sand.u32 %s34, 1
          %s2031 = scalar_lea.sflag [#allocation12], %s2030
          %s2032 = sand.u32 %s246, 1
          %s2033 = smul.addr %s2032, 2
          %s2034 = scalar_lea.vmem [#allocation13], %s2033
          %2035 = dma.done %s2031, 32
        $region88: #{tpu_custom_call.1} parent=75 // pred_fallthru
          _
      $region76: #{tpu_custom_call.1} parent=5 // pred_fallthru
        _
    $region6: #{tpu_custom_call.1} parent=1 // loop_footer
      %s32 = sadd.s32 1, %s28
    $region7: #{tpu_custom_call.1} parent=1 // loop_footer_branch
      %27 = sbr.rel target = $region3
    $region8: #{tpu_custom_call.1} parent=1 // loop_exit
      _
    %2036 = vsyncpa [#allocation4], 1
    %s2037 = scalar_lea.sflag [#allocation4], 1
    %2038 = vsyncpa %s2037, 1
    %2039 = vsyncpa [#allocation8], 1
    %2040 = vsyncpa [#allocation5], 1
    %s2041 = scalar_lea.sflag [#allocation5], 1
    %2042 = vsyncpa %s2041, 1
    %2043 = vsyncpa [#allocation12], 1
    %s2044 = scalar_lea.sflag [#allocation12], 1
    %2045 = vsyncpa %s2044, 1
    %2046 = vsyncpa [#allocation6], 1
    %s2047 = scalar_lea.sflag [#allocation6], 1
    %2048 = vsyncpa %s2047, 1

</llo_original>
